<compile_context>
chip_gen: v6e
topology: v6e:2x2x1
jax: 0.10.0
libtpu: 0.0.40
codegen_flags: <defaults>
</compile_context>

<pallas_src>
import functools

import jax
import jax.numpy as jnp
from jax import lax
from jax.experimental import pallas as pl
from jax.experimental.pallas import tpu as pltpu

_VMEM_LIMIT = 64 * 1024 * 1024          # explicit scoped-VMEM cap for larger tiles
_MATMUL_DTYPE = jnp.bfloat16            # MXU input dtype; accumulation stays f32


def _round_up(x, m):
    return ((x + m - 1) // m) * m


# ----------------------------- Pallas kernels ------------------------------

def _linear_kernel(x_ref, w_ref, b_ref, o_ref):
    o_ref[...] = (
        jnp.dot(x_ref[...].astype(_MATMUL_DTYPE),
                w_ref[...].astype(_MATMUL_DTYPE),
                preferred_element_type=jnp.float32)
        + b_ref[...])


def pallas_linear(x, w, b, row_tile=256):
    """y = x @ w + b.  x: [R, K], w: [K, N], b: [N] -> [R, N] (f32)."""
    R, K = x.shape
    N = w.shape[1]
    Rp = _round_up(R, 8)                       # only pad to the sublane multiple
    if Rp != R:
        x = jnp.pad(x, ((0, Rp - R), (0, 0)))
    tile = min(row_tile, Rp)
    out = pl.pallas_call(
        _linear_kernel,
        out_shape=jax.ShapeDtypeStruct((Rp, N), jnp.float32),
        grid=(pl.cdiv(Rp, tile),),
        in_specs=[
            pl.BlockSpec((tile, K), lambda i: (i, 0)),
            pl.BlockSpec((K, N), lambda i: (0, 0)),
            pl.BlockSpec((1, N), lambda i: (0, 0)),
        ],
        out_specs=pl.BlockSpec((tile, N), lambda i: (i, 0)),
        compiler_params=pltpu.CompilerParams(
            dimension_semantics=("parallel",),
            vmem_limit_bytes=_VMEM_LIMIT),
    )(x, w, b.reshape(1, N))
    return out[:R] if Rp != R else out


def _encoder_kernel(fr_ref, w_ref, b_ref, o_ref, *, M, F):
    """Fused gated time-encoder + windowed rDFT + frame-norm.

    Output columns: [0:M]        gated time features
                    [M:M+F]      magnitude
                    [M+F:M+2F]   cos(phase)
                    [M+2F:M+3F]  sin(phase)
                    [M+3F]       frame L2 norm
    """
    fr = fr_ref[...]
    y = jnp.dot(fr.astype(_MATMUL_DTYPE), w_ref[...].astype(_MATMUL_DTYPE),
                preferred_element_type=jnp.float32)            # [tile, 2M+2F]
    norm = jnp.sqrt(jnp.sum(fr * fr, axis=-1, keepdims=True) + 1e-8)
    inv_norm = pl.reciprocal(norm, approx=True)
    enc = y[:, :2 * M] * inv_norm + b_ref[...]                 # Linear(frames/norm)
    x_time = jax.nn.relu(enc[:, :M]) * jax.nn.sigmoid(enc[:, M:])
    re = y[:, 2 * M:2 * M + F]
    im = y[:, 2 * M + F:]
    mag = jnp.sqrt(re * re + im * im)
    inv_mag = pl.reciprocal(jnp.maximum(mag, 1e-8), approx=True)
    o_ref[:, 0:M] = x_time
    o_ref[:, M:M + F] = mag
    o_ref[:, M + F:M + 2 * F] = re * inv_mag                   # cos(angle)
    o_ref[:, M + 2 * F:M + 3 * F] = im * inv_mag               # sin(angle)
    o_ref[:, M + 3 * F:M + 3 * F + 1] = norm


def pallas_encoder(frames2d, w_comb, b_enc, M, F, row_tile=256):
    """frames2d: [R, N] -> [R, M + 3F + 1]   (one fused matmul per tile)."""
    R, N = frames2d.shape
    Wout = M + 3 * F + 1
    Rp = _round_up(R, 8)
    if Rp != R:
        frames2d = jnp.pad(frames2d, ((0, Rp - R), (0, 0)))
    tile = min(row_tile, Rp)
    out = pl.pallas_call(
        functools.partial(_encoder_kernel, M=M, F=F),
        out_shape=jax.ShapeDtypeStruct((Rp, Wout), jnp.float32),
        grid=(pl.cdiv(Rp, tile),),
        in_specs=[
            pl.BlockSpec((tile, N), lambda i: (i, 0)),
            pl.BlockSpec((N, w_comb.shape[1]), lambda i: (0, 0)),
            pl.BlockSpec((1, 2 * M), lambda i: (0, 0)),
        ],
        out_specs=pl.BlockSpec((tile, Wout), lambda i: (i, 0)),
        compiler_params=pltpu.CompilerParams(
            dimension_semantics=("parallel",),
            vmem_limit_bytes=_VMEM_LIMIT),
    )(frames2d, w_comb, b_enc.reshape(1, 2 * M))
    return out[:R] if Rp != R else out


def _lstm_kernel(gx_ref, whh_ref, o_ref, h_ref, c_ref):
    """Recurrence-only LSTM step over a T chunk.

    gx_ref: [tt, bt, 4H] precomputed x @ Wih + b for this chunk (time-major)
    whh_ref: [H, 4H]; (h, c) carried in VMEM scratch across grid steps.
    """
    H = whh_ref.shape[0]
    tt = gx_ref.shape[0]

    @pl.when(pl.program_id(1) == 0)
    def _():
        h_ref[...] = jnp.zeros_like(h_ref)
        c_ref[...] = jnp.zeros_like(c_ref)

    whh = whh_ref[...].astype(_MATMUL_DTYPE)    # hoisted out of the serial loop

    def step(t, carry):
        h, c = carry
        g = gx_ref[t] + jnp.dot(h.astype(_MATMUL_DTYPE), whh,
                                preferred_element_type=jnp.float32)   # [bt, 4H]
        i_g = jax.nn.sigmoid(g[:, 0:H])
        f_g = jax.nn.sigmoid(g[:, H:2 * H])
        c_g = jnp.tanh(g[:, 2 * H:3 * H])
        o_g = jax.nn.sigmoid(g[:, 3 * H:4 * H])
        c_new = f_g * c + i_g * c_g
        h_new = o_g * jnp.tanh(c_new)
        o_ref[t] = h_new
        return (h_new, c_new)

    h_fin, c_fin = lax.fori_loop(0, tt, step, (h_ref[...], c_ref[...]))
    h_ref[...] = h_fin
    c_ref[...] = c_fin


def pallas_lstm(x_bti, wih, whh, b, t_tile=256):
    """Single-layer batch-first LSTM (PyTorch gate order) -> outputs [B, T, H].

    x @ Wih + b is hoisted into one big parallel matmul; the recurrence kernel
    tiles T with a grid (arbitrary) and keeps (h, c) in persistent VMEM
    scratch.  A leading batch-block axis (parallel) lets megacore chips split
    independent sequences across TensorCores when B is large enough.
    """
    # TODO(synk): Memory with rnn_num_layers > 1 would stack this kernel.
    B, T, I = x_bti.shape
    H = whh.shape[0]
    x_tbi = jnp.transpose(x_bti, (1, 0, 2))                    # [T, B, I]
    gx = pallas_linear(x_tbi.reshape(T * B, I), wih, b)        # [T*B, 4H]
    gx = gx.reshape(T, B, 4 * H)

    bt = 8 if (B >= 8 and B % 8 == 0) else B                   # batch block
    nb = B // bt
    tt = min(t_tile, T)
    out = pl.pallas_call(
        _lstm_kernel,
        out_shape=jax.ShapeDtypeStruct((T, B, H), jnp.float32),
        grid=(nb, pl.cdiv(T, tt)),
        in_specs=[
            pl.BlockSpec((tt, bt, 4 * H), lambda bi, ti: (ti, bi, 0)),
            pl.BlockSpec((H, 4 * H), lambda bi, ti: (0, 0)),
        ],
        out_specs=pl.BlockSpec((tt, bt, H), lambda bi, ti: (ti, bi, 0)),
        scratch_shapes=[pltpu.VMEM((bt, H), jnp.float32),
                        pltpu.VMEM((bt, H), jnp.float32)],
        compiler_params=pltpu.CompilerParams(
            dimension_semantics=("parallel", "arbitrary"),
            vmem_limit_bytes=_VMEM_LIMIT),
    )(gx, whh)
    return jnp.transpose(out, (1, 0, 2))


# ------------------------------- glue (JAX) --------------------------------

def extract_frames(x, win, hop):
    """x: [R, L] -> [R, T, win] via the win = k*hop chunk trick (O(k) slices)."""
    assert win % hop == 0
    R, L = x.shape
    k = win // hop
    T = (L - win) // hop + 1
    n_chunks = T + k - 1
    chunks = x[:, :n_chunks * hop].reshape(R, n_chunks, hop)
    return jnp.concatenate([chunks[:, i:i + T] for i in range(k)], axis=-1)


def overlap_add(frames, hop):
    """frames: [B, T, G, N] with N = k*hop -> [B, T+k-1, G, hop] (O(k) updates)."""
    Bb, T, G, N = frames.shape
    k = N // hop
    out = jnp.zeros((Bb, T + k - 1, G, hop), frames.dtype)
    for i in range(k):
        out = out.at[:, i:i + T].add(frames[..., i * hop:(i + 1) * hop])
    return out


# ------------------------------- parameters --------------------------------

def init_params(key, cfg):
    S, C = cfg["num_sources"], cfg["num_channels"]
    N, M = cfg["win"], cfg["time_ftr"]
    F = N // 2 + 1
    H = cfg["hidden"]

    def dense(k, i, o):
        s = 1.0 / jnp.sqrt(i)
        kw, kb = jax.random.split(k)
        return (jax.random.uniform(kw, (i, o), jnp.float32, -s, s),
                jax.random.uniform(kb, (o,), jnp.float32, -s, s))

    def lstm(k, i, h):
        k1, k2, k3 = jax.random.split(k, 3)
        s = 1.0 / jnp.sqrt(h)
        return dict(
            wih=jax.random.uniform(k1, (i, 4 * h), jnp.float32, -s, s),
            whh=jax.random.uniform(k2, (h, 4 * h), jnp.float32, -s, s),
            b=jax.random.uniform(k3, (4 * h,), jnp.float32, -s, s),
        )

    keys = jax.random.split(key, 11)
    p = {}
    time_enc_w, p["time_enc_b"] = dense(keys[0], N, 2 * M)        # gated encoder
    p["time_dec_w"], _ = dense(keys[1], M, N)
    p["time_dec_b"] = jnp.zeros((N,), jnp.float32)
    p["time_skip_w"], p["time_skip_b"] = dense(keys[2], C * M, H)
    p["time_mask_w"], p["time_mask_b"] = dense(keys[3], H, S * C * M)
    p["spec_skip_w"], p["spec_skip_b"] = dense(keys[4], C * F, H)
    p["spec_mask_w"], p["spec_mask_b"] = dense(keys[5], H, S * C * F)
    p["time_rnn_in"] = lstm(keys[6], C * M, H)
    p["spec_rnn_in"] = lstm(keys[7], C * F, H)
    p["hybrid_rnn"] = lstm(keys[8], 2 * H, 2 * H)
    p["time_rnn_out"] = lstm(keys[9], H, H)
    p["spec_rnn_out"] = lstm(keys[10], H, H)

    # Periodic Hamming window (torch default).
    window = (0.54 - 0.46 * jnp.cos(
        2.0 * jnp.pi * jnp.arange(N) / N)).astype(jnp.float32)
    p["window"] = window

    # Analysis rDFT basis with the window folded into its columns, fused with
    # the time-encoder weight into one [N, 2M + 2F] matmul operand.
    n = jnp.arange(N)[:, None].astype(jnp.float32)
    kk = jnp.arange(F)[None, :].astype(jnp.float32)
    ang = 2.0 * jnp.pi * n * kk / N
    dft = jnp.concatenate([jnp.cos(ang), -jnp.sin(ang)], axis=1)       # [N, 2F]
    p["enc_comb_w"] = jnp.concatenate(
        [time_enc_w, dft * window[:, None]], axis=1)                   # [N, 2M+2F]

    # iDFT basis with the synthesis window folded in.
    eye = jnp.eye(F, dtype=jnp.complex64)
    m_re = jnp.fft.irfft(eye, n=N, axis=1)
    m_im = jnp.fft.irfft(1j * eye, n=N, axis=1)
    idft = jnp.concatenate([m_re, m_im], axis=0).astype(jnp.float32)   # [2F, N]
    p["idft_w"] = idft * window[None, :]
    p["zero_n"] = jnp.zeros((N,), jnp.float32)
    return p


# --------------------------------- forward ---------------------------------

def hstasnet_forward(params, waveform, cfg):
    S, C = cfg["num_sources"], cfg["num_channels"]
    N, O, M = cfg["win"], cfg["hop"], cfg["time_ftr"]
    F = N // 2 + 1
    H = cfg["hidden"]
    B, C_, L = waveform.shape
    assert C_ == C
    x = waveform.reshape(B * C, L)

    frames = extract_frames(x, N, O)                                  # [BC, T, N]
    T = frames.shape[1]

    # --------------------- fused time / spec encoder ------------------------
    enc = pallas_encoder(frames.reshape(B * C * T, N),
                         params["enc_comb_w"], params["time_enc_b"], M, F)
    x_time = enc[:, :M].reshape(B, C, T, M)
    mag = enc[:, M:M + F].reshape(B, C, T, F)
    cosp = enc[:, M + F:M + 2 * F].reshape(B, C, T, F)
    sinp = enc[:, M + 2 * F:M + 3 * F].reshape(B, C, T, F)
    x_norm = enc[:, M + 3 * F:].reshape(B, C, T)

    s_time = jnp.transpose(x_time, (0, 2, 1, 3)).reshape(B, T, C * M)
    s_spec = jnp.transpose(mag, (0, 2, 1, 3)).reshape(B, T, C * F)
    cos_bt = jnp.transpose(cosp, (0, 2, 1, 3))                        # [B,T,C,F]
    sin_bt = jnp.transpose(sinp, (0, 2, 1, 3))
    norm_bt = jnp.transpose(x_norm, (0, 2, 1))                        # [B,T,C]

    y_time = pallas_lstm(s_time, **params["time_rnn_in"])             # [B,T,H]
    y_spec = pallas_lstm(s_spec, **params["spec_rnn_in"])             # [B,T,H]

    # ------------------------------- hybrid ---------------------------------
    y = jnp.concatenate([y_time, y_spec], axis=2)                     # [B,T,2H]
    y = pallas_lstm(y, **params["hybrid_rnn"])
    y_time, y_spec = y[..., :H], y[..., H:]

    y_time = pallas_lstm(y_time, **params["time_rnn_out"])
    y_time = y_time + pallas_linear(
        s_time.reshape(B * T, C * M),
        params["time_skip_w"], params["time_skip_b"]).reshape(B, T, H)

    y_spec = pallas_lstm(y_spec, **params["spec_rnn_out"])
    y_spec = y_spec + pallas_linear(
        s_spec.reshape(B * T, C * F),
        params["spec_skip_w"], params["spec_skip_b"]).reshape(B, T, H)

    # --------------------------- masks + decode -----------------------------
    m_time = pallas_linear(y_time.reshape(B * T, H),
                           params["time_mask_w"],
                           params["time_mask_b"]).reshape(B, T, S, C, M)
    masked_t = m_time * s_time.reshape(B, T, 1, C, M)                 # bcast over S
    dec = pallas_linear(masked_t.reshape(B * T * S * C, M),
                        params["time_dec_w"], params["time_dec_b"])
    dec = dec.reshape(B, T, S, C, N) * norm_bt.reshape(B, T, 1, C, 1)
    z_time = overlap_add(dec.reshape(B, T, S * C, N), O)              # [B,T',SC,O]

    m_spec = pallas_linear(y_spec.reshape(B * T, H),
                           params["spec_mask_w"],
                           params["spec_mask_b"]).reshape(B, T, S, C, F)
    masked_s = m_spec * s_spec.reshape(B, T, 1, C, F)
    re_s = masked_s * cos_bt.reshape(B, T, 1, C, F)
    im_s = masked_s * sin_bt.reshape(B, T, 1, C, F)
    spec_ri = jnp.concatenate([re_s, im_s], axis=-1).reshape(B * T * S * C, 2 * F)
    iframes = pallas_linear(spec_ri, params["idft_w"], params["zero_n"])
    num = overlap_add(iframes.reshape(B, T, S * C, N), O)             # [B,T',SC,O]
    win_sq = jnp.broadcast_to((params["window"] ** 2).reshape(1, 1, 1, N),
                              (1, T, 1, N))
    den = overlap_add(win_sq, O)                                       # [1,T',1,O]
    z_spec = num / jnp.maximum(den, 1e-8)

    z = z_time + z_spec                                                # [B,T',SC,O]
    Lout = z.shape[1] * O
    out = jnp.transpose(z, (0, 2, 1, 3)).reshape(B, S, C, Lout)
    # TODO(synk): optional `length` padding branch omitted (length=None path).
    return out


# ----------------------------------- main -----------------------------------

if __name__ == "__main__":
    cfg = dict(num_sources=2, num_channels=2, win=16, hop=8, time_ftr=32, hidden=32)
    key = jax.random.PRNGKey(0)
    kp, kx = jax.random.split(key)
    params = init_params(kp, cfg)

    B, C, L = 2, cfg["num_channels"], 64
    waveform = jax.random.normal(kx, (B, C, L), jnp.float32)

    fwd = jax.jit(functools.partial(hstasnet_forward, cfg=cfg))
    out = jax.block_until_ready(fwd(params, waveform))
    assert out.shape == (B, cfg["num_sources"], C, L), out.shape
    assert bool(jnp.all(jnp.isfinite(out)))
    print("KERNEL_OK")
</pallas_src>

<mosaic_0001>
module attributes {stable_mosaic.version = 11 : i64} {
  func.func @_encoder_kernel(%arg0: i32, %arg1: memref<32x16xf32, #tpu.memory_space<vmem>>, %arg2: memref<16x82xf32, #tpu.memory_space<vmem>>, %arg3: memref<1x64xf32, #tpu.memory_space<vmem>>, %arg4: memref<32x60xf32, #tpu.memory_space<vmem>>) attributes {dimension_semantics = [#tpu.dimension_semantics<parallel>], iteration_bounds = array<i64: 1>, scalar_prefetch = 0 : i64, scratch_operands = 0 : i64, tpu.core_type = #tpu.core_type<tc>, window_params = [{transform_indices = @transform_0, window_bounds = array<i64: 32, 16>}, {pipeline_mode = #tpu.pipeline_mode<synchronous>, transform_indices = @transform_1, window_bounds = array<i64: 16, 82>}, {pipeline_mode = #tpu.pipeline_mode<synchronous>, transform_indices = @transform_2, window_bounds = array<i64: 1, 64>}, {transform_indices = @transform_3, window_bounds = array<i64: 32, 60>}]} {
    %c0 = arith.constant 0 : index
    %c0_0 = arith.constant 0 : index
    %0 = vector.load %arg1[%c0, %c0_0] : memref<32x16xf32, #tpu.memory_space<vmem>>, vector<32x16xf32>
    %1 = arith.truncf %0 : vector<32x16xf32> to vector<32x16xbf16>
    %c0_1 = arith.constant 0 : index
    %c0_2 = arith.constant 0 : index
    %2 = vector.load %arg2[%c0_1, %c0_2] : memref<16x82xf32, #tpu.memory_space<vmem>>, vector<16x82xf32>
    %3 = arith.truncf %2 : vector<16x82xf32> to vector<16x82xbf16>
    %cst = arith.constant dense<0.000000e+00> : vector<32x82xf32>
    %4 = tpu.matmul %1, %3, %cst {dimension_numbers = #tpu.dot_dimension_numbers<[1], [0], [0], [1], [0, 0, 1, 1], [], []>} : vector<32x16xbf16>, vector<16x82xbf16>, vector<32x82xf32> -> vector<32x82xf32>
    %5 = arith.mulf %0, %0 : vector<32x16xf32>
    %cst_3 = arith.constant dense<0.000000e+00> : vector<32xf32>
    %6 = vector.multi_reduction <add>, %5, %cst_3 [1] : vector<32x16xf32> to vector<32xf32>
    %7 = vector.shape_cast %6 : vector<32xf32> to vector<32x1xf32>
    %cst_4 = arith.constant 9.99999993E-9 : f32
    %8 = vector.broadcast %cst_4 : f32 to vector<32x1xf32>
    %9 = arith.addf %7, %8 : vector<32x1xf32>
    %10 = math.sqrt %9 : vector<32x1xf32>
    %11 = tpu.reciprocal %10 {approx = true} : vector<32x1xf32> -> vector<32x1xf32>
    %12 = vector.extract_strided_slice %4 {offsets = [0, 0], sizes = [32, 64], strides = [1, 1]} : vector<32x82xf32> to vector<32x64xf32>
    %13 = vector.broadcast %11 : vector<32x1xf32> to vector<32x64xf32>
    %14 = arith.mulf %12, %13 : vector<32x64xf32>
    %c0_5 = arith.constant 0 : index
    %c0_6 = arith.constant 0 : index
    %15 = vector.load %arg3[%c0_5, %c0_6] : memref<1x64xf32, #tpu.memory_space<vmem>>, vector<1x64xf32>
    %16 = vector.broadcast %15 : vector<1x64xf32> to vector<32x64xf32>
    %17 = arith.addf %14, %16 : vector<32x64xf32>
    %18 = vector.extract_strided_slice %17 {offsets = [0, 0], sizes = [32, 32], strides = [1, 1]} : vector<32x64xf32> to vector<32x32xf32>
    %cst_7 = arith.constant 0.000000e+00 : f32
    %19 = vector.broadcast %cst_7 : f32 to vector<32x32xf32>
    %20 = arith.maximumf %18, %19 : vector<32x32xf32>
    %21 = vector.extract_strided_slice %17 {offsets = [0, 32], sizes = [32, 32], strides = [1, 1]} : vector<32x64xf32> to vector<32x32xf32>
    %22 = arith.negf %21 : vector<32x32xf32>
    %23 = math.exp %22 : vector<32x32xf32>
    %cst_8 = arith.constant 1.000000e+00 : f32
    %24 = vector.broadcast %cst_8 : f32 to vector<32x32xf32>
    %25 = arith.addf %24, %23 : vector<32x32xf32>
    %26 = arith.divf %24, %25 : vector<32x32xf32>
    %27 = arith.mulf %20, %26 : vector<32x32xf32>
    %28 = vector.extract_strided_slice %4 {offsets = [0, 64], sizes = [32, 9], strides = [1, 1]} : vector<32x82xf32> to vector<32x9xf32>
    %29 = vector.extract_strided_slice %4 {offsets = [0, 73], sizes = [32, 9], strides = [1, 1]} : vector<32x82xf32> to vector<32x9xf32>
    %30 = arith.mulf %28, %28 : vector<32x9xf32>
    %31 = arith.mulf %29, %29 : vector<32x9xf32>
    %32 = arith.addf %30, %31 : vector<32x9xf32>
    %33 = math.sqrt %32 : vector<32x9xf32>
    %cst_9 = arith.constant 9.99999993E-9 : f32
    %34 = vector.broadcast %cst_9 : f32 to vector<32x9xf32>
    %35 = arith.maximumf %33, %34 : vector<32x9xf32>
    %36 = tpu.reciprocal %35 {approx = true} : vector<32x9xf32> -> vector<32x9xf32>
    %c0_10 = arith.constant 0 : index
    %c0_11 = arith.constant 0 : index
    %37 = vector.load %arg4[%c0_10, %c0_11] : memref<32x60xf32, #tpu.memory_space<vmem>>, vector<32x32xf32>
    tpu.vector_store %arg4[%c0_10, %c0_11], %27 {strides = array<i32>} : memref<32x60xf32, #tpu.memory_space<vmem>>, vector<32x32xf32>,
    %c0_12 = arith.constant 0 : index
    %c32 = arith.constant 32 : index
    %38 = vector.load %arg4[%c0_12, %c32] : memref<32x60xf32, #tpu.memory_space<vmem>>, vector<32x9xf32>
    tpu.vector_store %arg4[%c0_12, %c32], %33 {strides = array<i32>} : memref<32x60xf32, #tpu.memory_space<vmem>>, vector<32x9xf32>,
    %39 = arith.mulf %28, %36 : vector<32x9xf32>
    %c0_13 = arith.constant 0 : index
    %c41 = arith.constant 41 : index
    %40 = vector.load %arg4[%c0_13, %c41] : memref<32x60xf32, #tpu.memory_space<vmem>>, vector<32x9xf32>
    tpu.vector_store %arg4[%c0_13, %c41], %39 {strides = array<i32>} : memref<32x60xf32, #tpu.memory_space<vmem>>, vector<32x9xf32>,
    %41 = arith.mulf %29, %36 : vector<32x9xf32>
    %c0_14 = arith.constant 0 : index
    %c50 = arith.constant 50 : index
    %42 = vector.load %arg4[%c0_14, %c50] : memref<32x60xf32, #tpu.memory_space<vmem>>, vector<32x9xf32>
    tpu.vector_store %arg4[%c0_14, %c50], %41 {strides = array<i32>} : memref<32x60xf32, #tpu.memory_space<vmem>>, vector<32x9xf32>,
    %c0_15 = arith.constant 0 : index
    %c59 = arith.constant 59 : index
    %43 = vector.load %arg4[%c0_15, %c59] : memref<32x60xf32, #tpu.memory_space<vmem>>, vector<32x1xf32>
    tpu.vector_store %arg4[%c0_15, %c59], %10 {strides = array<i32>} : memref<32x60xf32, #tpu.memory_space<vmem>>, vector<32x1xf32>,
    return
  }
  func.func @transform_0(%arg0: i32) -> (i32, i32) {
    %c0_i32 = arith.constant 0 : i32
    %c0_i32_0 = arith.constant 0 : i32
    return %arg0, %c0_i32 : i32, i32
  }
  func.func @transform_1(%arg0: i32) -> (i32, i32) {
    %c0_i32 = arith.constant 0 : i32
    %c0_i32_0 = arith.constant 0 : i32
    %c0_i32_1 = arith.constant 0 : i32
    return %c0_i32, %c0_i32_0 : i32, i32
  }
  func.func @transform_2(%arg0: i32) -> (i32, i32) {
    %c0_i32 = arith.constant 0 : i32
    %c0_i32_0 = arith.constant 0 : i32
    %c0_i32_1 = arith.constant 0 : i32
    return %c0_i32, %c0_i32_0 : i32, i32
  }
  func.func @transform_3(%arg0: i32) -> (i32, i32) {
    %c0_i32 = arith.constant 0 : i32
    %c0_i32_0 = arith.constant 0 : i32
    return %arg0, %c0_i32 : i32, i32
  }
}

module attributes {stable_mosaic.version = 11 : i64} {
  func.func @_linear_kernel(%arg0: i32, %arg1: memref<16x18xf32, #tpu.memory_space<vmem>>, %arg2: memref<18x128xf32, #tpu.memory_space<vmem>>, %arg3: memref<1x128xf32, #tpu.memory_space<vmem>>, %arg4: memref<16x128xf32, #tpu.memory_space<vmem>>) attributes {dimension_semantics = [#tpu.dimension_semantics<parallel>], iteration_bounds = array<i64: 1>, scalar_prefetch = 0 : i64, scratch_operands = 0 : i64, tpu.core_type = #tpu.core_type<tc>, window_params = [{transform_indices = @transform_0, window_bounds = array<i64: 16, 18>}, {pipeline_mode = #tpu.pipeline_mode<synchronous>, transform_indices = @transform_1, window_bounds = array<i64: 18, 128>}, {pipeline_mode = #tpu.pipeline_mode<synchronous>, transform_indices = @transform_2, window_bounds = array<i64: 1, 128>}, {transform_indices = @transform_3, window_bounds = array<i64: 16, 128>}]} {
    %c0 = arith.constant 0 : index
    %c0_0 = arith.constant 0 : index
    %0 = vector.load %arg1[%c0, %c0_0] : memref<16x18xf32, #tpu.memory_space<vmem>>, vector<16x18xf32>
    %1 = arith.truncf %0 : vector<16x18xf32> to vector<16x18xbf16>
    %c0_1 = arith.constant 0 : index
    %c0_2 = arith.constant 0 : index
    %2 = vector.load %arg2[%c0_1, %c0_2] : memref<18x128xf32, #tpu.memory_space<vmem>>, vector<18x128xf32>
    %3 = arith.truncf %2 : vector<18x128xf32> to vector<18x128xbf16>
    %cst = arith.constant dense<0.000000e+00> : vector<16x128xf32>
    %4 = tpu.matmul %1, %3, %cst {dimension_numbers = #tpu.dot_dimension_numbers<[1], [0], [0], [1], [0, 0, 1, 1], [], []>} : vector<16x18xbf16>, vector<18x128xbf16>, vector<16x128xf32> -> vector<16x128xf32>
    %c0_3 = arith.constant 0 : index
    %c0_4 = arith.constant 0 : index
    %5 = vector.load %arg3[%c0_3, %c0_4] : memref<1x128xf32, #tpu.memory_space<vmem>>, vector<1x128xf32>
    %6 = vector.broadcast %5 : vector<1x128xf32> to vector<16x128xf32>
    %7 = arith.addf %4, %6 : vector<16x128xf32>
    %c0_5 = arith.constant 0 : index
    %c0_6 = arith.constant 0 : index
    %8 = vector.load %arg4[%c0_5, %c0_6] : memref<16x128xf32, #tpu.memory_space<vmem>>, vector<16x128xf32>
    tpu.vector_store %arg4[%c0_5, %c0_6], %7 {strides = array<i32>} : memref<16x128xf32, #tpu.memory_space<vmem>>, vector<16x128xf32>,
    return
  }
  func.func @transform_0(%arg0: i32) -> (i32, i32) {
    %c0_i32 = arith.constant 0 : i32
    %c0_i32_0 = arith.constant 0 : i32
    return %arg0, %c0_i32 : i32, i32
  }
  func.func @transform_1(%arg0: i32) -> (i32, i32) {
    %c0_i32 = arith.constant 0 : i32
    %c0_i32_0 = arith.constant 0 : i32
    %c0_i32_1 = arith.constant 0 : i32
    return %c0_i32, %c0_i32_0 : i32, i32
  }
  func.func @transform_2(%arg0: i32) -> (i32, i32) {
    %c0_i32 = arith.constant 0 : i32
    %c0_i32_0 = arith.constant 0 : i32
    %c0_i32_1 = arith.constant 0 : i32
    return %c0_i32, %c0_i32_0 : i32, i32
  }
  func.func @transform_3(%arg0: i32) -> (i32, i32) {
    %c0_i32 = arith.constant 0 : i32
    %c0_i32_0 = arith.constant 0 : i32
    return %arg0, %c0_i32 : i32, i32
  }
}

module attributes {stable_mosaic.version = 11 : i64} {
  func.func @_lstm_kernel(%arg0: i32, %arg1: i32, %arg2: memref<7x2x128xf32, #tpu.memory_space<vmem>>, %arg3: memref<32x128xf32, #tpu.memory_space<vmem>>, %arg4: memref<7x2x32xf32, #tpu.memory_space<vmem>>, %arg5: memref<2x32xf32, #tpu.memory_space<vmem>>, %arg6: memref<2x32xf32, #tpu.memory_space<vmem>>) attributes {dimension_semantics = [#tpu.dimension_semantics<parallel>, #tpu.dimension_semantics<arbitrary>], iteration_bounds = array<i64: 1, 1>, scalar_prefetch = 0 : i64, scratch_operands = 2 : i64, tpu.core_type = #tpu.core_type<tc>, window_params = [{transform_indices = @transform_0, window_bounds = array<i64: 7, 2, 128>}, {pipeline_mode = #tpu.pipeline_mode<synchronous>, transform_indices = @transform_1, window_bounds = array<i64: 32, 128>}, {transform_indices = @transform_2, window_bounds = array<i64: 7, 2, 32>}]} {
    %c0_i32 = arith.constant 0 : i32
    %0 = arith.cmpi eq, %arg1, %c0_i32 : i32
    %1 = arith.extui %0 : i1 to i32
    %c0_i32_0 = arith.constant 0 : i32
    %2 = arith.cmpi ne, %1, %c0_i32_0 : i32
    scf.if %2 {
      %cst = arith.constant 0.000000e+00 : f32
      %11 = vector.broadcast %cst : f32 to vector<2x32xf32>
      %c0_12 = arith.constant 0 : index
      %c0_13 = arith.constant 0 : index
      %12 = vector.load %arg5[%c0_12, %c0_13] : memref<2x32xf32, #tpu.memory_space<vmem>>, vector<2x32xf32>
      tpu.vector_store %arg5[%c0_12, %c0_13], %11 {strides = array<i32>} : memref<2x32xf32, #tpu.memory_space<vmem>>, vector<2x32xf32>,
      %cst_14 = arith.constant 0.000000e+00 : f32
      %13 = vector.broadcast %cst_14 : f32 to vector<2x32xf32>
      %c0_15 = arith.constant 0 : index
      %c0_16 = arith.constant 0 : index
      %14 = vector.load %arg6[%c0_15, %c0_16] : memref<2x32xf32, #tpu.memory_space<vmem>>, vector<2x32xf32>
      tpu.vector_store %arg6[%c0_15, %c0_16], %13 {strides = array<i32>} : memref<2x32xf32, #tpu.memory_space<vmem>>, vector<2x32xf32>,
    } else {
    }
    %c0 = arith.constant 0 : index
    %c0_1 = arith.constant 0 : index
    %3 = vector.load %arg3[%c0, %c0_1] : memref<32x128xf32, #tpu.memory_space<vmem>>, vector<32x128xf32>
    %4 = arith.truncf %3 : vector<32x128xf32> to vector<32x128xbf16>
    %c0_2 = arith.constant 0 : index
    %c0_3 = arith.constant 0 : index
    %5 = vector.load %arg5[%c0_2, %c0_3] : memref<2x32xf32, #tpu.memory_space<vmem>>, vector<2x32xf32>
    %c0_4 = arith.constant 0 : index
    %c0_5 = arith.constant 0 : index
    %6 = vector.load %arg6[%c0_4, %c0_5] : memref<2x32xf32, #tpu.memory_space<vmem>>, vector<2x32xf32>
    %c0_i32_6 = arith.constant 0 : i32
    %c7_i32 = arith.constant 7 : i32
    %7 = arith.addi %c0_i32_6, %c7_i32 : i32
    %c1_i32 = arith.constant 1 : i32
    %8:2 = scf.for %arg7 = %c0_i32_6 to %7 step %c1_i32 iter_args(%arg8 = %5, %arg9 = %6) -> (vector<2x32xf32>, vector<2x32xf32>)  : i32 {
      %11 = arith.index_cast %arg7 : i32 to index
      %c0_12 = arith.constant 0 : index
      %c0_13 = arith.constant 0 : index
      %12 = vector.load %arg2[%11, %c0_12, %c0_13] : memref<7x2x128xf32, #tpu.memory_space<vmem>>, vector<1x2x128xf32>
      %13 = vector.shape_cast %12 : vector<1x2x128xf32> to vector<2x128xf32>
      %14 = arith.truncf %arg8 : vector<2x32xf32> to vector<2x32xbf16>
      %cst = arith.constant dense<0.000000e+00> : vector<2x128xf32>
      %15 = tpu.matmul %14, %4, %cst {dimension_numbers = #tpu.dot_dimension_numbers<[1], [0], [0], [1], [0, 0, 1, 1], [], []>} : vector<2x32xbf16>, vector<32x128xbf16>, vector<2x128xf32> -> vector<2x128xf32>
      %16 = arith.addf %13, %15 : vector<2x128xf32>
      %17 = vector.extract_strided_slice %16 {offsets = [0, 0], sizes = [2, 32], strides = [1, 1]} : vector<2x128xf32> to vector<2x32xf32>
      %18 = arith.negf %17 : vector<2x32xf32>
      %19 = math.exp %18 : vector<2x32xf32>
      %cst_14 = arith.constant 1.000000e+00 : f32
      %20 = vector.broadcast %cst_14 : f32 to vector<2x32xf32>
      %21 = arith.addf %20, %19 : vector<2x32xf32>
      %22 = arith.divf %20, %21 : vector<2x32xf32>
      %23 = vector.extract_strided_slice %16 {offsets = [0, 32], sizes = [2, 32], strides = [1, 1]} : vector<2x128xf32> to vector<2x32xf32>
      %24 = arith.negf %23 : vector<2x32xf32>
      %25 = math.exp %24 : vector<2x32xf32>
      %cst_15 = arith.constant 1.000000e+00 : f32
      %26 = vector.broadcast %cst_15 : f32 to vector<2x32xf32>
      %27 = arith.addf %26, %25 : vector<2x32xf32>
      %28 = arith.divf %26, %27 : vector<2x32xf32>
      %29 = vector.extract_strided_slice %16 {offsets = [0, 64], sizes = [2, 32], strides = [1, 1]} : vector<2x128xf32> to vector<2x32xf32>
      %30 = math.tanh %29 : vector<2x32xf32>
      %31 = vector.extract_strided_slice %16 {offsets = [0, 96], sizes = [2, 32], strides = [1, 1]} : vector<2x128xf32> to vector<2x32xf32>
      %32 = arith.negf %31 : vector<2x32xf32>
      %33 = math.exp %32 : vector<2x32xf32>
      %cst_16 = arith.constant 1.000000e+00 : f32
      %34 = vector.broadcast %cst_16 : f32 to vector<2x32xf32>
      %35 = arith.addf %34, %33 : vector<2x32xf32>
      %36 = arith.divf %34, %35 : vector<2x32xf32>
      %37 = arith.mulf %28, %arg9 : vector<2x32xf32>
      %38 = arith.mulf %22, %30 : vector<2x32xf32>
      %39 = arith.addf %37, %38 : vector<2x32xf32>
      %40 = math.tanh %39 : vector<2x32xf32>
      %41 = arith.mulf %36, %40 : vector<2x32xf32>
      %42 = arith.index_cast %arg7 : i32 to index
      %c0_17 = arith.constant 0 : index
      %c0_18 = arith.constant 0 : index
      %43 = vector.load %arg4[%42, %c0_17, %c0_18] : memref<7x2x32xf32, #tpu.memory_space<vmem>>, vector<1x2x32xf32>
      %44 = vector.shape_cast %43 : vector<1x2x32xf32> to vector<2x32xf32>
      %45 = vector.shape_cast %41 : vector<2x32xf32> to vector<1x2x32xf32>
      tpu.vector_store %arg4[%42, %c0_17, %c0_18], %45 {strides = array<i32>} : memref<7x2x32xf32, #tpu.memory_space<vmem>>, vector<1x2x32xf32>,
      scf.yield %41, %39 : vector<2x32xf32>, vector<2x32xf32>
    }
    %c7_i32_7 = arith.constant 7 : i32
    %c0_8 = arith.constant 0 : index
    %c0_9 = arith.constant 0 : index
    %9 = vector.load %arg5[%c0_8, %c0_9] : memref<2x32xf32, #tpu.memory_space<vmem>>, vector<2x32xf32>
    tpu.vector_store %arg5[%c0_8, %c0_9], %8#0 {strides = array<i32>} : memref<2x32xf32, #tpu.memory_space<vmem>>, vector<2x32xf32>,
    %c0_10 = arith.constant 0 : index
    %c0_11 = arith.constant 0 : index
    %10 = vector.load %arg6[%c0_10, %c0_11] : memref<2x32xf32, #tpu.memory_space<vmem>>, vector<2x32xf32>
    tpu.vector_store %arg6[%c0_10, %c0_11], %8#1 {strides = array<i32>} : memref<2x32xf32, #tpu.memory_space<vmem>>, vector<2x32xf32>,
    return
  }
  func.func @transform_0(%arg0: i32, %arg1: i32) -> (i32, i32, i32) {
    %c0_i32 = arith.constant 0 : i32
    %c0_i32_0 = arith.constant 0 : i32
    return %arg1, %arg0, %c0_i32 : i32, i32, i32
  }
  func.func @transform_1(%arg0: i32, %arg1: i32) -> (i32, i32) {
    %c0_i32 = arith.constant 0 : i32
    %c0_i32_0 = arith.constant 0 : i32
    %c0_i32_1 = arith.constant 0 : i32
    return %c0_i32, %c0_i32_0 : i32, i32
  }
  func.func @transform_2(%arg0: i32, %arg1: i32) -> (i32, i32, i32) {
    %c0_i32 = arith.constant 0 : i32
    %c0_i32_0 = arith.constant 0 : i32
    return %arg1, %arg0, %c0_i32 : i32, i32, i32
  }
}

module attributes {stable_mosaic.version = 11 : i64} {
  func.func @_linear_kernel(%arg0: i32, %arg1: memref<16x64xf32, #tpu.memory_space<vmem>>, %arg2: memref<64x128xf32, #tpu.memory_space<vmem>>, %arg3: memref<1x128xf32, #tpu.memory_space<vmem>>, %arg4: memref<16x128xf32, #tpu.memory_space<vmem>>) attributes {dimension_semantics = [#tpu.dimension_semantics<parallel>], iteration_bounds = array<i64: 1>, scalar_prefetch = 0 : i64, scratch_operands = 0 : i64, tpu.core_type = #tpu.core_type<tc>, window_params = [{transform_indices = @transform_0, window_bounds = array<i64: 16, 64>}, {pipeline_mode = #tpu.pipeline_mode<synchronous>, transform_indices = @transform_1, window_bounds = array<i64: 64, 128>}, {pipeline_mode = #tpu.pipeline_mode<synchronous>, transform_indices = @transform_2, window_bounds = array<i64: 1, 128>}, {transform_indices = @transform_3, window_bounds = array<i64: 16, 128>}]} {
    %c0 = arith.constant 0 : index
    %c0_0 = arith.constant 0 : index
    %0 = vector.load %arg1[%c0, %c0_0] : memref<16x64xf32, #tpu.memory_space<vmem>>, vector<16x64xf32>
    %1 = arith.truncf %0 : vector<16x64xf32> to vector<16x64xbf16>
    %c0_1 = arith.constant 0 : index
    %c0_2 = arith.constant 0 : index
    %2 = vector.load %arg2[%c0_1, %c0_2] : memref<64x128xf32, #tpu.memory_space<vmem>>, vector<64x128xf32>
    %3 = arith.truncf %2 : vector<64x128xf32> to vector<64x128xbf16>
    %cst = arith.constant dense<0.000000e+00> : vector<16x128xf32>
    %4 = tpu.matmul %1, %3, %cst {dimension_numbers = #tpu.dot_dimension_numbers<[1], [0], [0], [1], [0, 0, 1, 1], [], []>} : vector<16x64xbf16>, vector<64x128xbf16>, vector<16x128xf32> -> vector<16x128xf32>
    %c0_3 = arith.constant 0 : index
    %c0_4 = arith.constant 0 : index
    %5 = vector.load %arg3[%c0_3, %c0_4] : memref<1x128xf32, #tpu.memory_space<vmem>>, vector<1x128xf32>
    %6 = vector.broadcast %5 : vector<1x128xf32> to vector<16x128xf32>
    %7 = arith.addf %4, %6 : vector<16x128xf32>
    %c0_5 = arith.constant 0 : index
    %c0_6 = arith.constant 0 : index
    %8 = vector.load %arg4[%c0_5, %c0_6] : memref<16x128xf32, #tpu.memory_space<vmem>>, vector<16x128xf32>
    tpu.vector_store %arg4[%c0_5, %c0_6], %7 {strides = array<i32>} : memref<16x128xf32, #tpu.memory_space<vmem>>, vector<16x128xf32>,
    return
  }
  func.func @transform_0(%arg0: i32) -> (i32, i32) {
    %c0_i32 = arith.constant 0 : i32
    %c0_i32_0 = arith.constant 0 : i32
    return %arg0, %c0_i32 : i32, i32
  }
  func.func @transform_1(%arg0: i32) -> (i32, i32) {
    %c0_i32 = arith.constant 0 : i32
    %c0_i32_0 = arith.constant 0 : i32
    %c0_i32_1 = arith.constant 0 : i32
    return %c0_i32, %c0_i32_0 : i32, i32
  }
  func.func @transform_2(%arg0: i32) -> (i32, i32) {
    %c0_i32 = arith.constant 0 : i32
    %c0_i32_0 = arith.constant 0 : i32
    %c0_i32_1 = arith.constant 0 : i32
    return %c0_i32, %c0_i32_0 : i32, i32
  }
  func.func @transform_3(%arg0: i32) -> (i32, i32) {
    %c0_i32 = arith.constant 0 : i32
    %c0_i32_0 = arith.constant 0 : i32
    return %arg0, %c0_i32 : i32, i32
  }
}

module attributes {stable_mosaic.version = 11 : i64} {
  func.func @_linear_kernel(%arg0: i32, %arg1: memref<16x64xf32, #tpu.memory_space<vmem>>, %arg2: memref<64x256xf32, #tpu.memory_space<vmem>>, %arg3: memref<1x256xf32, #tpu.memory_space<vmem>>, %arg4: memref<16x256xf32, #tpu.memory_space<vmem>>) attributes {dimension_semantics = [#tpu.dimension_semantics<parallel>], iteration_bounds = array<i64: 1>, scalar_prefetch = 0 : i64, scratch_operands = 0 : i64, tpu.core_type = #tpu.core_type<tc>, window_params = [{transform_indices = @transform_0, window_bounds = array<i64: 16, 64>}, {pipeline_mode = #tpu.pipeline_mode<synchronous>, transform_indices = @transform_1, window_bounds = array<i64: 64, 256>}, {pipeline_mode = #tpu.pipeline_mode<synchronous>, transform_indices = @transform_2, window_bounds = array<i64: 1, 256>}, {transform_indices = @transform_3, window_bounds = array<i64: 16, 256>}]} {
    %c0 = arith.constant 0 : index
    %c0_0 = arith.constant 0 : index
    %0 = vector.load %arg1[%c0, %c0_0] : memref<16x64xf32, #tpu.memory_space<vmem>>, vector<16x64xf32>
    %1 = arith.truncf %0 : vector<16x64xf32> to vector<16x64xbf16>
    %c0_1 = arith.constant 0 : index
    %c0_2 = arith.constant 0 : index
    %2 = vector.load %arg2[%c0_1, %c0_2] : memref<64x256xf32, #tpu.memory_space<vmem>>, vector<64x256xf32>
    %3 = arith.truncf %2 : vector<64x256xf32> to vector<64x256xbf16>
    %cst = arith.constant dense<0.000000e+00> : vector<16x256xf32>
    %4 = tpu.matmul %1, %3, %cst {dimension_numbers = #tpu.dot_dimension_numbers<[1], [0], [0], [1], [0, 0, 1, 1], [], []>} : vector<16x64xbf16>, vector<64x256xbf16>, vector<16x256xf32> -> vector<16x256xf32>
    %c0_3 = arith.constant 0 : index
    %c0_4 = arith.constant 0 : index
    %5 = vector.load %arg3[%c0_3, %c0_4] : memref<1x256xf32, #tpu.memory_space<vmem>>, vector<1x256xf32>
    %6 = vector.broadcast %5 : vector<1x256xf32> to vector<16x256xf32>
    %7 = arith.addf %4, %6 : vector<16x256xf32>
    %c0_5 = arith.constant 0 : index
    %c0_6 = arith.constant 0 : index
    %8 = vector.load %arg4[%c0_5, %c0_6] : memref<16x256xf32, #tpu.memory_space<vmem>>, vector<16x256xf32>
    tpu.vector_store %arg4[%c0_5, %c0_6], %7 {strides = array<i32>} : memref<16x256xf32, #tpu.memory_space<vmem>>, vector<16x256xf32>,
    return
  }
  func.func @transform_0(%arg0: i32) -> (i32, i32) {
    %c0_i32 = arith.constant 0 : i32
    %c0_i32_0 = arith.constant 0 : i32
    return %arg0, %c0_i32 : i32, i32
  }
  func.func @transform_1(%arg0: i32) -> (i32, i32) {
    %c0_i32 = arith.constant 0 : i32
    %c0_i32_0 = arith.constant 0 : i32
    %c0_i32_1 = arith.constant 0 : i32
    return %c0_i32, %c0_i32_0 : i32, i32
  }
  func.func @transform_2(%arg0: i32) -> (i32, i32) {
    %c0_i32 = arith.constant 0 : i32
    %c0_i32_0 = arith.constant 0 : i32
    %c0_i32_1 = arith.constant 0 : i32
    return %c0_i32, %c0_i32_0 : i32, i32
  }
  func.func @transform_3(%arg0: i32) -> (i32, i32) {
    %c0_i32 = arith.constant 0 : i32
    %c0_i32_0 = arith.constant 0 : i32
    return %arg0, %c0_i32 : i32, i32
  }
}

module attributes {stable_mosaic.version = 11 : i64} {
  func.func @_lstm_kernel(%arg0: i32, %arg1: i32, %arg2: memref<7x2x256xf32, #tpu.memory_space<vmem>>, %arg3: memref<64x256xf32, #tpu.memory_space<vmem>>, %arg4: memref<7x2x64xf32, #tpu.memory_space<vmem>>, %arg5: memref<2x64xf32, #tpu.memory_space<vmem>>, %arg6: memref<2x64xf32, #tpu.memory_space<vmem>>) attributes {dimension_semantics = [#tpu.dimension_semantics<parallel>, #tpu.dimension_semantics<arbitrary>], iteration_bounds = array<i64: 1, 1>, scalar_prefetch = 0 : i64, scratch_operands = 2 : i64, tpu.core_type = #tpu.core_type<tc>, window_params = [{transform_indices = @transform_0, window_bounds = array<i64: 7, 2, 256>}, {pipeline_mode = #tpu.pipeline_mode<synchronous>, transform_indices = @transform_1, window_bounds = array<i64: 64, 256>}, {transform_indices = @transform_2, window_bounds = array<i64: 7, 2, 64>}]} {
    %c0_i32 = arith.constant 0 : i32
    %0 = arith.cmpi eq, %arg1, %c0_i32 : i32
    %1 = arith.extui %0 : i1 to i32
    %c0_i32_0 = arith.constant 0 : i32
    %2 = arith.cmpi ne, %1, %c0_i32_0 : i32
    scf.if %2 {
      %cst = arith.constant 0.000000e+00 : f32
      %11 = vector.broadcast %cst : f32 to vector<2x64xf32>
      %c0_12 = arith.constant 0 : index
      %c0_13 = arith.constant 0 : index
      %12 = vector.load %arg5[%c0_12, %c0_13] : memref<2x64xf32, #tpu.memory_space<vmem>>, vector<2x64xf32>
      tpu.vector_store %arg5[%c0_12, %c0_13], %11 {strides = array<i32>} : memref<2x64xf32, #tpu.memory_space<vmem>>, vector<2x64xf32>,
      %cst_14 = arith.constant 0.000000e+00 : f32
      %13 = vector.broadcast %cst_14 : f32 to vector<2x64xf32>
      %c0_15 = arith.constant 0 : index
      %c0_16 = arith.constant 0 : index
      %14 = vector.load %arg6[%c0_15, %c0_16] : memref<2x64xf32, #tpu.memory_space<vmem>>, vector<2x64xf32>
      tpu.vector_store %arg6[%c0_15, %c0_16], %13 {strides = array<i32>} : memref<2x64xf32, #tpu.memory_space<vmem>>, vector<2x64xf32>,
    } else {
    }
    %c0 = arith.constant 0 : index
    %c0_1 = arith.constant 0 : index
    %3 = vector.load %arg3[%c0, %c0_1] : memref<64x256xf32, #tpu.memory_space<vmem>>, vector<64x256xf32>
    %4 = arith.truncf %3 : vector<64x256xf32> to vector<64x256xbf16>
    %c0_2 = arith.constant 0 : index
    %c0_3 = arith.constant 0 : index
    %5 = vector.load %arg5[%c0_2, %c0_3] : memref<2x64xf32, #tpu.memory_space<vmem>>, vector<2x64xf32>
    %c0_4 = arith.constant 0 : index
    %c0_5 = arith.constant 0 : index
    %6 = vector.load %arg6[%c0_4, %c0_5] : memref<2x64xf32, #tpu.memory_space<vmem>>, vector<2x64xf32>
    %c0_i32_6 = arith.constant 0 : i32
    %c7_i32 = arith.constant 7 : i32
    %7 = arith.addi %c0_i32_6, %c7_i32 : i32
    %c1_i32 = arith.constant 1 : i32
    %8:2 = scf.for %arg7 = %c0_i32_6 to %7 step %c1_i32 iter_args(%arg8 = %5, %arg9 = %6) -> (vector<2x64xf32>, vector<2x64xf32>)  : i32 {
      %11 = arith.index_cast %arg7 : i32 to index
      %c0_12 = arith.constant 0 : index
      %c0_13 = arith.constant 0 : index
      %12 = vector.load %arg2[%11, %c0_12, %c0_13] : memref<7x2x256xf32, #tpu.memory_space<vmem>>, vector<1x2x256xf32>
      %13 = vector.shape_cast %12 : vector<1x2x256xf32> to vector<2x256xf32>
      %14 = arith.truncf %arg8 : vector<2x64xf32> to vector<2x64xbf16>
      %cst = arith.constant dense<0.000000e+00> : vector<2x256xf32>
      %15 = tpu.matmul %14, %4, %cst {dimension_numbers = #tpu.dot_dimension_numbers<[1], [0], [0], [1], [0, 0, 1, 1], [], []>} : vector<2x64xbf16>, vector<64x256xbf16>, vector<2x256xf32> -> vector<2x256xf32>
      %16 = arith.addf %13, %15 : vector<2x256xf32>
      %17 = vector.extract_strided_slice %16 {offsets = [0, 0], sizes = [2, 64], strides = [1, 1]} : vector<2x256xf32> to vector<2x64xf32>
      %18 = arith.negf %17 : vector<2x64xf32>
      %19 = math.exp %18 : vector<2x64xf32>
      %cst_14 = arith.constant 1.000000e+00 : f32
      %20 = vector.broadcast %cst_14 : f32 to vector<2x64xf32>
      %21 = arith.addf %20, %19 : vector<2x64xf32>
      %22 = arith.divf %20, %21 : vector<2x64xf32>
      %23 = vector.extract_strided_slice %16 {offsets = [0, 64], sizes = [2, 64], strides = [1, 1]} : vector<2x256xf32> to vector<2x64xf32>
      %24 = arith.negf %23 : vector<2x64xf32>
      %25 = math.exp %24 : vector<2x64xf32>
      %cst_15 = arith.constant 1.000000e+00 : f32
      %26 = vector.broadcast %cst_15 : f32 to vector<2x64xf32>
      %27 = arith.addf %26, %25 : vector<2x64xf32>
      %28 = arith.divf %26, %27 : vector<2x64xf32>
      %29 = vector.extract_strided_slice %16 {offsets = [0, 128], sizes = [2, 64], strides = [1, 1]} : vector<2x256xf32> to vector<2x64xf32>
      %30 = math.tanh %29 : vector<2x64xf32>
      %31 = vector.extract_strided_slice %16 {offsets = [0, 192], sizes = [2, 64], strides = [1, 1]} : vector<2x256xf32> to vector<2x64xf32>
      %32 = arith.negf %31 : vector<2x64xf32>
      %33 = math.exp %32 : vector<2x64xf32>
      %cst_16 = arith.constant 1.000000e+00 : f32
      %34 = vector.broadcast %cst_16 : f32 to vector<2x64xf32>
      %35 = arith.addf %34, %33 : vector<2x64xf32>
      %36 = arith.divf %34, %35 : vector<2x64xf32>
      %37 = arith.mulf %28, %arg9 : vector<2x64xf32>
      %38 = arith.mulf %22, %30 : vector<2x64xf32>
      %39 = arith.addf %37, %38 : vector<2x64xf32>
      %40 = math.tanh %39 : vector<2x64xf32>
      %41 = arith.mulf %36, %40 : vector<2x64xf32>
      %42 = arith.index_cast %arg7 : i32 to index
      %c0_17 = arith.constant 0 : index
      %c0_18 = arith.constant 0 : index
      %43 = vector.load %arg4[%42, %c0_17, %c0_18] : memref<7x2x64xf32, #tpu.memory_space<vmem>>, vector<1x2x64xf32>
      %44 = vector.shape_cast %43 : vector<1x2x64xf32> to vector<2x64xf32>
      %45 = vector.shape_cast %41 : vector<2x64xf32> to vector<1x2x64xf32>
      tpu.vector_store %arg4[%42, %c0_17, %c0_18], %45 {strides = array<i32>} : memref<7x2x64xf32, #tpu.memory_space<vmem>>, vector<1x2x64xf32>,
      scf.yield %41, %39 : vector<2x64xf32>, vector<2x64xf32>
    }
    %c7_i32_7 = arith.constant 7 : i32
    %c0_8 = arith.constant 0 : index
    %c0_9 = arith.constant 0 : index
    %9 = vector.load %arg5[%c0_8, %c0_9] : memref<2x64xf32, #tpu.memory_space<vmem>>, vector<2x64xf32>
    tpu.vector_store %arg5[%c0_8, %c0_9], %8#0 {strides = array<i32>} : memref<2x64xf32, #tpu.memory_space<vmem>>, vector<2x64xf32>,
    %c0_10 = arith.constant 0 : index
    %c0_11 = arith.constant 0 : index
    %10 = vector.load %arg6[%c0_10, %c0_11] : memref<2x64xf32, #tpu.memory_space<vmem>>, vector<2x64xf32>
    tpu.vector_store %arg6[%c0_10, %c0_11], %8#1 {strides = array<i32>} : memref<2x64xf32, #tpu.memory_space<vmem>>, vector<2x64xf32>,
    return
  }
  func.func @transform_0(%arg0: i32, %arg1: i32) -> (i32, i32, i32) {
    %c0_i32 = arith.constant 0 : i32
    %c0_i32_0 = arith.constant 0 : i32
    return %arg1, %arg0, %c0_i32 : i32, i32, i32
  }
  func.func @transform_1(%arg0: i32, %arg1: i32) -> (i32, i32) {
    %c0_i32 = arith.constant 0 : i32
    %c0_i32_0 = arith.constant 0 : i32
    %c0_i32_1 = arith.constant 0 : i32
    return %c0_i32, %c0_i32_0 : i32, i32
  }
  func.func @transform_2(%arg0: i32, %arg1: i32) -> (i32, i32, i32) {
    %c0_i32 = arith.constant 0 : i32
    %c0_i32_0 = arith.constant 0 : i32
    return %arg1, %arg0, %c0_i32 : i32, i32, i32
  }
}

module attributes {stable_mosaic.version = 11 : i64} {
  func.func @_linear_kernel(%arg0: i32, %arg1: memref<16x32xf32, #tpu.memory_space<vmem>>, %arg2: memref<32x128xf32, #tpu.memory_space<vmem>>, %arg3: memref<1x128xf32, #tpu.memory_space<vmem>>, %arg4: memref<16x128xf32, #tpu.memory_space<vmem>>) attributes {dimension_semantics = [#tpu.dimension_semantics<parallel>], iteration_bounds = array<i64: 1>, scalar_prefetch = 0 : i64, scratch_operands = 0 : i64, tpu.core_type = #tpu.core_type<tc>, window_params = [{transform_indices = @transform_0, window_bounds = array<i64: 16, 32>}, {pipeline_mode = #tpu.pipeline_mode<synchronous>, transform_indices = @transform_1, window_bounds = array<i64: 32, 128>}, {pipeline_mode = #tpu.pipeline_mode<synchronous>, transform_indices = @transform_2, window_bounds = array<i64: 1, 128>}, {transform_indices = @transform_3, window_bounds = array<i64: 16, 128>}]} {
    %c0 = arith.constant 0 : index
    %c0_0 = arith.constant 0 : index
    %0 = vector.load %arg1[%c0, %c0_0] : memref<16x32xf32, #tpu.memory_space<vmem>>, vector<16x32xf32>
    %1 = arith.truncf %0 : vector<16x32xf32> to vector<16x32xbf16>
    %c0_1 = arith.constant 0 : index
    %c0_2 = arith.constant 0 : index
    %2 = vector.load %arg2[%c0_1, %c0_2] : memref<32x128xf32, #tpu.memory_space<vmem>>, vector<32x128xf32>
    %3 = arith.truncf %2 : vector<32x128xf32> to vector<32x128xbf16>
    %cst = arith.constant dense<0.000000e+00> : vector<16x128xf32>
    %4 = tpu.matmul %1, %3, %cst {dimension_numbers = #tpu.dot_dimension_numbers<[1], [0], [0], [1], [0, 0, 1, 1], [], []>} : vector<16x32xbf16>, vector<32x128xbf16>, vector<16x128xf32> -> vector<16x128xf32>
    %c0_3 = arith.constant 0 : index
    %c0_4 = arith.constant 0 : index
    %5 = vector.load %arg3[%c0_3, %c0_4] : memref<1x128xf32, #tpu.memory_space<vmem>>, vector<1x128xf32>
    %6 = vector.broadcast %5 : vector<1x128xf32> to vector<16x128xf32>
    %7 = arith.addf %4, %6 : vector<16x128xf32>
    %c0_5 = arith.constant 0 : index
    %c0_6 = arith.constant 0 : index
    %8 = vector.load %arg4[%c0_5, %c0_6] : memref<16x128xf32, #tpu.memory_space<vmem>>, vector<16x128xf32>
    tpu.vector_store %arg4[%c0_5, %c0_6], %7 {strides = array<i32>} : memref<16x128xf32, #tpu.memory_space<vmem>>, vector<16x128xf32>,
    return
  }
  func.func @transform_0(%arg0: i32) -> (i32, i32) {
    %c0_i32 = arith.constant 0 : i32
    %c0_i32_0 = arith.constant 0 : i32
    return %arg0, %c0_i32 : i32, i32
  }
  func.func @transform_1(%arg0: i32) -> (i32, i32) {
    %c0_i32 = arith.constant 0 : i32
    %c0_i32_0 = arith.constant 0 : i32
    %c0_i32_1 = arith.constant 0 : i32
    return %c0_i32, %c0_i32_0 : i32, i32
  }
  func.func @transform_2(%arg0: i32) -> (i32, i32) {
    %c0_i32 = arith.constant 0 : i32
    %c0_i32_0 = arith.constant 0 : i32
    %c0_i32_1 = arith.constant 0 : i32
    return %c0_i32, %c0_i32_0 : i32, i32
  }
  func.func @transform_3(%arg0: i32) -> (i32, i32) {
    %c0_i32 = arith.constant 0 : i32
    %c0_i32_0 = arith.constant 0 : i32
    return %arg0, %c0_i32 : i32, i32
  }
}

module attributes {stable_mosaic.version = 11 : i64} {
  func.func @_linear_kernel(%arg0: i32, %arg1: memref<16x18xf32, #tpu.memory_space<vmem>>, %arg2: memref<18x32xf32, #tpu.memory_space<vmem>>, %arg3: memref<1x32xf32, #tpu.memory_space<vmem>>, %arg4: memref<16x32xf32, #tpu.memory_space<vmem>>) attributes {dimension_semantics = [#tpu.dimension_semantics<parallel>], iteration_bounds = array<i64: 1>, scalar_prefetch = 0 : i64, scratch_operands = 0 : i64, tpu.core_type = #tpu.core_type<tc>, window_params = [{transform_indices = @transform_0, window_bounds = array<i64: 16, 18>}, {pipeline_mode = #tpu.pipeline_mode<synchronous>, transform_indices = @transform_1, window_bounds = array<i64: 18, 32>}, {pipeline_mode = #tpu.pipeline_mode<synchronous>, transform_indices = @transform_2, window_bounds = array<i64: 1, 32>}, {transform_indices = @transform_3, window_bounds = array<i64: 16, 32>}]} {
    %c0 = arith.constant 0 : index
    %c0_0 = arith.constant 0 : index
    %0 = vector.load %arg1[%c0, %c0_0] : memref<16x18xf32, #tpu.memory_space<vmem>>, vector<16x18xf32>
    %1 = arith.truncf %0 : vector<16x18xf32> to vector<16x18xbf16>
    %c0_1 = arith.constant 0 : index
    %c0_2 = arith.constant 0 : index
    %2 = vector.load %arg2[%c0_1, %c0_2] : memref<18x32xf32, #tpu.memory_space<vmem>>, vector<18x32xf32>
    %3 = arith.truncf %2 : vector<18x32xf32> to vector<18x32xbf16>
    %cst = arith.constant dense<0.000000e+00> : vector<16x32xf32>
    %4 = tpu.matmul %1, %3, %cst {dimension_numbers = #tpu.dot_dimension_numbers<[1], [0], [0], [1], [0, 0, 1, 1], [], []>} : vector<16x18xbf16>, vector<18x32xbf16>, vector<16x32xf32> -> vector<16x32xf32>
    %c0_3 = arith.constant 0 : index
    %c0_4 = arith.constant 0 : index
    %5 = vector.load %arg3[%c0_3, %c0_4] : memref<1x32xf32, #tpu.memory_space<vmem>>, vector<1x32xf32>
    %6 = vector.broadcast %5 : vector<1x32xf32> to vector<16x32xf32>
    %7 = arith.addf %4, %6 : vector<16x32xf32>
    %c0_5 = arith.constant 0 : index
    %c0_6 = arith.constant 0 : index
    %8 = vector.load %arg4[%c0_5, %c0_6] : memref<16x32xf32, #tpu.memory_space<vmem>>, vector<16x32xf32>
    tpu.vector_store %arg4[%c0_5, %c0_6], %7 {strides = array<i32>} : memref<16x32xf32, #tpu.memory_space<vmem>>, vector<16x32xf32>,
    return
  }
  func.func @transform_0(%arg0: i32) -> (i32, i32) {
    %c0_i32 = arith.constant 0 : i32
    %c0_i32_0 = arith.constant 0 : i32
    return %arg0, %c0_i32 : i32, i32
  }
  func.func @transform_1(%arg0: i32) -> (i32, i32) {
    %c0_i32 = arith.constant 0 : i32
    %c0_i32_0 = arith.constant 0 : i32
    %c0_i32_1 = arith.constant 0 : i32
    return %c0_i32, %c0_i32_0 : i32, i32
  }
  func.func @transform_2(%arg0: i32) -> (i32, i32) {
    %c0_i32 = arith.constant 0 : i32
    %c0_i32_0 = arith.constant 0 : i32
    %c0_i32_1 = arith.constant 0 : i32
    return %c0_i32, %c0_i32_0 : i32, i32
  }
  func.func @transform_3(%arg0: i32) -> (i32, i32) {
    %c0_i32 = arith.constant 0 : i32
    %c0_i32_0 = arith.constant 0 : i32
    return %arg0, %c0_i32 : i32, i32
  }
}

module attributes {stable_mosaic.version = 11 : i64} {
  func.func @_linear_kernel(%arg0: i32, %arg1: memref<16x32xf32, #tpu.memory_space<vmem>>, %arg2: memref<32x36xf32, #tpu.memory_space<vmem>>, %arg3: memref<1x36xf32, #tpu.memory_space<vmem>>, %arg4: memref<16x36xf32, #tpu.memory_space<vmem>>) attributes {dimension_semantics = [#tpu.dimension_semantics<parallel>], iteration_bounds = array<i64: 1>, scalar_prefetch = 0 : i64, scratch_operands = 0 : i64, tpu.core_type = #tpu.core_type<tc>, window_params = [{transform_indices = @transform_0, window_bounds = array<i64: 16, 32>}, {pipeline_mode = #tpu.pipeline_mode<synchronous>, transform_indices = @transform_1, window_bounds = array<i64: 32, 36>}, {pipeline_mode = #tpu.pipeline_mode<synchronous>, transform_indices = @transform_2, window_bounds = array<i64: 1, 36>}, {transform_indices = @transform_3, window_bounds = array<i64: 16, 36>}]} {
    %c0 = arith.constant 0 : index
    %c0_0 = arith.constant 0 : index
    %0 = vector.load %arg1[%c0, %c0_0] : memref<16x32xf32, #tpu.memory_space<vmem>>, vector<16x32xf32>
    %1 = arith.truncf %0 : vector<16x32xf32> to vector<16x32xbf16>
    %c0_1 = arith.constant 0 : index
    %c0_2 = arith.constant 0 : index
    %2 = vector.load %arg2[%c0_1, %c0_2] : memref<32x36xf32, #tpu.memory_space<vmem>>, vector<32x36xf32>
    %3 = arith.truncf %2 : vector<32x36xf32> to vector<32x36xbf16>
    %cst = arith.constant dense<0.000000e+00> : vector<16x36xf32>
    %4 = tpu.matmul %1, %3, %cst {dimension_numbers = #tpu.dot_dimension_numbers<[1], [0], [0], [1], [0, 0, 1, 1], [], []>} : vector<16x32xbf16>, vector<32x36xbf16>, vector<16x36xf32> -> vector<16x36xf32>
    %c0_3 = arith.constant 0 : index
    %c0_4 = arith.constant 0 : index
    %5 = vector.load %arg3[%c0_3, %c0_4] : memref<1x36xf32, #tpu.memory_space<vmem>>, vector<1x36xf32>
    %6 = vector.broadcast %5 : vector<1x36xf32> to vector<16x36xf32>
    %7 = arith.addf %4, %6 : vector<16x36xf32>
    %c0_5 = arith.constant 0 : index
    %c0_6 = arith.constant 0 : index
    %8 = vector.load %arg4[%c0_5, %c0_6] : memref<16x36xf32, #tpu.memory_space<vmem>>, vector<16x36xf32>
    tpu.vector_store %arg4[%c0_5, %c0_6], %7 {strides = array<i32>} : memref<16x36xf32, #tpu.memory_space<vmem>>, vector<16x36xf32>,
    return
  }
  func.func @transform_0(%arg0: i32) -> (i32, i32) {
    %c0_i32 = arith.constant 0 : i32
    %c0_i32_0 = arith.constant 0 : i32
    return %arg0, %c0_i32 : i32, i32
  }
  func.func @transform_1(%arg0: i32) -> (i32, i32) {
    %c0_i32 = arith.constant 0 : i32
    %c0_i32_0 = arith.constant 0 : i32
    %c0_i32_1 = arith.constant 0 : i32
    return %c0_i32, %c0_i32_0 : i32, i32
  }
  func.func @transform_2(%arg0: i32) -> (i32, i32) {
    %c0_i32 = arith.constant 0 : i32
    %c0_i32_0 = arith.constant 0 : i32
    %c0_i32_1 = arith.constant 0 : i32
    return %c0_i32, %c0_i32_0 : i32, i32
  }
  func.func @transform_3(%arg0: i32) -> (i32, i32) {
    %c0_i32 = arith.constant 0 : i32
    %c0_i32_0 = arith.constant 0 : i32
    return %arg0, %c0_i32 : i32, i32
  }
}

module attributes {stable_mosaic.version = 11 : i64} {
  func.func @_linear_kernel(%arg0: i32, %arg1: memref<16x64xf32, #tpu.memory_space<vmem>>, %arg2: memref<64x32xf32, #tpu.memory_space<vmem>>, %arg3: memref<1x32xf32, #tpu.memory_space<vmem>>, %arg4: memref<16x32xf32, #tpu.memory_space<vmem>>) attributes {dimension_semantics = [#tpu.dimension_semantics<parallel>], iteration_bounds = array<i64: 1>, scalar_prefetch = 0 : i64, scratch_operands = 0 : i64, tpu.core_type = #tpu.core_type<tc>, window_params = [{transform_indices = @transform_0, window_bounds = array<i64: 16, 64>}, {pipeline_mode = #tpu.pipeline_mode<synchronous>, transform_indices = @transform_1, window_bounds = array<i64: 64, 32>}, {pipeline_mode = #tpu.pipeline_mode<synchronous>, transform_indices = @transform_2, window_bounds = array<i64: 1, 32>}, {transform_indices = @transform_3, window_bounds = array<i64: 16, 32>}]} {
    %c0 = arith.constant 0 : index
    %c0_0 = arith.constant 0 : index
    %0 = vector.load %arg1[%c0, %c0_0] : memref<16x64xf32, #tpu.memory_space<vmem>>, vector<16x64xf32>
    %1 = arith.truncf %0 : vector<16x64xf32> to vector<16x64xbf16>
    %c0_1 = arith.constant 0 : index
    %c0_2 = arith.constant 0 : index
    %2 = vector.load %arg2[%c0_1, %c0_2] : memref<64x32xf32, #tpu.memory_space<vmem>>, vector<64x32xf32>
    %3 = arith.truncf %2 : vector<64x32xf32> to vector<64x32xbf16>
    %cst = arith.constant dense<0.000000e+00> : vector<16x32xf32>
    %4 = tpu.matmul %1, %3, %cst {dimension_numbers = #tpu.dot_dimension_numbers<[1], [0], [0], [1], [0, 0, 1, 1], [], []>} : vector<16x64xbf16>, vector<64x32xbf16>, vector<16x32xf32> -> vector<16x32xf32>
    %c0_3 = arith.constant 0 : index
    %c0_4 = arith.constant 0 : index
    %5 = vector.load %arg3[%c0_3, %c0_4] : memref<1x32xf32, #tpu.memory_space<vmem>>, vector<1x32xf32>
    %6 = vector.broadcast %5 : vector<1x32xf32> to vector<16x32xf32>
    %7 = arith.addf %4, %6 : vector<16x32xf32>
    %c0_5 = arith.constant 0 : index
    %c0_6 = arith.constant 0 : index
    %8 = vector.load %arg4[%c0_5, %c0_6] : memref<16x32xf32, #tpu.memory_space<vmem>>, vector<16x32xf32>
    tpu.vector_store %arg4[%c0_5, %c0_6], %7 {strides = array<i32>} : memref<16x32xf32, #tpu.memory_space<vmem>>, vector<16x32xf32>,
    return
  }
  func.func @transform_0(%arg0: i32) -> (i32, i32) {
    %c0_i32 = arith.constant 0 : i32
    %c0_i32_0 = arith.constant 0 : i32
    return %arg0, %c0_i32 : i32, i32
  }
  func.func @transform_1(%arg0: i32) -> (i32, i32) {
    %c0_i32 = arith.constant 0 : i32
    %c0_i32_0 = arith.constant 0 : i32
    %c0_i32_1 = arith.constant 0 : i32
    return %c0_i32, %c0_i32_0 : i32, i32
  }
  func.func @transform_2(%arg0: i32) -> (i32, i32) {
    %c0_i32 = arith.constant 0 : i32
    %c0_i32_0 = arith.constant 0 : i32
    %c0_i32_1 = arith.constant 0 : i32
    return %c0_i32, %c0_i32_0 : i32, i32
  }
  func.func @transform_3(%arg0: i32) -> (i32, i32) {
    %c0_i32 = arith.constant 0 : i32
    %c0_i32_0 = arith.constant 0 : i32
    return %arg0, %c0_i32 : i32, i32
  }
}

module attributes {stable_mosaic.version = 11 : i64} {
  func.func @_linear_kernel(%arg0: i32, %arg1: memref<56x18xf32, #tpu.memory_space<vmem>>, %arg2: memref<18x16xf32, #tpu.memory_space<vmem>>, %arg3: memref<1x16xf32, #tpu.memory_space<vmem>>, %arg4: memref<56x16xf32, #tpu.memory_space<vmem>>) attributes {dimension_semantics = [#tpu.dimension_semantics<parallel>], iteration_bounds = array<i64: 1>, scalar_prefetch = 0 : i64, scratch_operands = 0 : i64, tpu.core_type = #tpu.core_type<tc>, window_params = [{transform_indices = @transform_0, window_bounds = array<i64: 56, 18>}, {pipeline_mode = #tpu.pipeline_mode<synchronous>, transform_indices = @transform_1, window_bounds = array<i64: 18, 16>}, {pipeline_mode = #tpu.pipeline_mode<synchronous>, transform_indices = @transform_2, window_bounds = array<i64: 1, 16>}, {transform_indices = @transform_3, window_bounds = array<i64: 56, 16>}]} {
    %c0 = arith.constant 0 : index
    %c0_0 = arith.constant 0 : index
    %0 = vector.load %arg1[%c0, %c0_0] : memref<56x18xf32, #tpu.memory_space<vmem>>, vector<56x18xf32>
    %1 = arith.truncf %0 : vector<56x18xf32> to vector<56x18xbf16>
    %c0_1 = arith.constant 0 : index
    %c0_2 = arith.constant 0 : index
    %2 = vector.load %arg2[%c0_1, %c0_2] : memref<18x16xf32, #tpu.memory_space<vmem>>, vector<18x16xf32>
    %3 = arith.truncf %2 : vector<18x16xf32> to vector<18x16xbf16>
    %cst = arith.constant dense<0.000000e+00> : vector<56x16xf32>
    %4 = tpu.matmul %1, %3, %cst {dimension_numbers = #tpu.dot_dimension_numbers<[1], [0], [0], [1], [0, 0, 1, 1], [], []>} : vector<56x18xbf16>, vector<18x16xbf16>, vector<56x16xf32> -> vector<56x16xf32>
    %c0_3 = arith.constant 0 : index
    %c0_4 = arith.constant 0 : index
    %5 = vector.load %arg3[%c0_3, %c0_4] : memref<1x16xf32, #tpu.memory_space<vmem>>, vector<1x16xf32>
    %6 = vector.broadcast %5 : vector<1x16xf32> to vector<56x16xf32>
    %7 = arith.addf %4, %6 : vector<56x16xf32>
    %c0_5 = arith.constant 0 : index
    %c0_6 = arith.constant 0 : index
    %8 = vector.load %arg4[%c0_5, %c0_6] : memref<56x16xf32, #tpu.memory_space<vmem>>, vector<56x16xf32>
    tpu.vector_store %arg4[%c0_5, %c0_6], %7 {strides = array<i32>} : memref<56x16xf32, #tpu.memory_space<vmem>>, vector<56x16xf32>,
    return
  }
  func.func @transform_0(%arg0: i32) -> (i32, i32) {
    %c0_i32 = arith.constant 0 : i32
    %c0_i32_0 = arith.constant 0 : i32
    return %arg0, %c0_i32 : i32, i32
  }
  func.func @transform_1(%arg0: i32) -> (i32, i32) {
    %c0_i32 = arith.constant 0 : i32
    %c0_i32_0 = arith.constant 0 : i32
    %c0_i32_1 = arith.constant 0 : i32
    return %c0_i32, %c0_i32_0 : i32, i32
  }
  func.func @transform_2(%arg0: i32) -> (i32, i32) {
    %c0_i32 = arith.constant 0 : i32
    %c0_i32_0 = arith.constant 0 : i32
    %c0_i32_1 = arith.constant 0 : i32
    return %c0_i32, %c0_i32_0 : i32, i32
  }
  func.func @transform_3(%arg0: i32) -> (i32, i32) {
    %c0_i32 = arith.constant 0 : i32
    %c0_i32_0 = arith.constant 0 : i32
    return %arg0, %c0_i32 : i32, i32
  }
}

module attributes {stable_mosaic.version = 11 : i64} {
  func.func @_linear_kernel(%arg0: i32, %arg1: memref<56x32xf32, #tpu.memory_space<vmem>>, %arg2: memref<32x16xf32, #tpu.memory_space<vmem>>, %arg3: memref<1x16xf32, #tpu.memory_space<vmem>>, %arg4: memref<56x16xf32, #tpu.memory_space<vmem>>) attributes {dimension_semantics = [#tpu.dimension_semantics<parallel>], iteration_bounds = array<i64: 1>, scalar_prefetch = 0 : i64, scratch_operands = 0 : i64, tpu.core_type = #tpu.core_type<tc>, window_params = [{transform_indices = @transform_0, window_bounds = array<i64: 56, 32>}, {pipeline_mode = #tpu.pipeline_mode<synchronous>, transform_indices = @transform_1, window_bounds = array<i64: 32, 16>}, {pipeline_mode = #tpu.pipeline_mode<synchronous>, transform_indices = @transform_2, window_bounds = array<i64: 1, 16>}, {transform_indices = @transform_3, window_bounds = array<i64: 56, 16>}]} {
    %c0 = arith.constant 0 : index
    %c0_0 = arith.constant 0 : index
    %0 = vector.load %arg1[%c0, %c0_0] : memref<56x32xf32, #tpu.memory_space<vmem>>, vector<56x32xf32>
    %1 = arith.truncf %0 : vector<56x32xf32> to vector<56x32xbf16>
    %c0_1 = arith.constant 0 : index
    %c0_2 = arith.constant 0 : index
    %2 = vector.load %arg2[%c0_1, %c0_2] : memref<32x16xf32, #tpu.memory_space<vmem>>, vector<32x16xf32>
    %3 = arith.truncf %2 : vector<32x16xf32> to vector<32x16xbf16>
    %cst = arith.constant dense<0.000000e+00> : vector<56x16xf32>
    %4 = tpu.matmul %1, %3, %cst {dimension_numbers = #tpu.dot_dimension_numbers<[1], [0], [0], [1], [0, 0, 1, 1], [], []>} : vector<56x32xbf16>, vector<32x16xbf16>, vector<56x16xf32> -> vector<56x16xf32>
    %c0_3 = arith.constant 0 : index
    %c0_4 = arith.constant 0 : index
    %5 = vector.load %arg3[%c0_3, %c0_4] : memref<1x16xf32, #tpu.memory_space<vmem>>, vector<1x16xf32>
    %6 = vector.broadcast %5 : vector<1x16xf32> to vector<56x16xf32>
    %7 = arith.addf %4, %6 : vector<56x16xf32>
    %c0_5 = arith.constant 0 : index
    %c0_6 = arith.constant 0 : index
    %8 = vector.load %arg4[%c0_5, %c0_6] : memref<56x16xf32, #tpu.memory_space<vmem>>, vector<56x16xf32>
    tpu.vector_store %arg4[%c0_5, %c0_6], %7 {strides = array<i32>} : memref<56x16xf32, #tpu.memory_space<vmem>>, vector<56x16xf32>,
    return
  }
  func.func @transform_0(%arg0: i32) -> (i32, i32) {
    %c0_i32 = arith.constant 0 : i32
    %c0_i32_0 = arith.constant 0 : i32
    return %arg0, %c0_i32 : i32, i32
  }
  func.func @transform_1(%arg0: i32) -> (i32, i32) {
    %c0_i32 = arith.constant 0 : i32
    %c0_i32_0 = arith.constant 0 : i32
    %c0_i32_1 = arith.constant 0 : i32
    return %c0_i32, %c0_i32_0 : i32, i32
  }
  func.func @transform_2(%arg0: i32) -> (i32, i32) {
    %c0_i32 = arith.constant 0 : i32
    %c0_i32_0 = arith.constant 0 : i32
    %c0_i32_1 = arith.constant 0 : i32
    return %c0_i32, %c0_i32_0 : i32, i32
  }
  func.func @transform_3(%arg0: i32) -> (i32, i32) {
    %c0_i32 = arith.constant 0 : i32
    %c0_i32_0 = arith.constant 0 : i32
    return %arg0, %c0_i32 : i32, i32
  }
}

</mosaic_0001>

<llo_original>
// kernel: hstasnet_forward.17
$region0: #{hstasnet_forward.17}
  #allocation0 [shape = 'u32[]', space=smem, size = 0x4, offset = 0x4, fixed_abs, tag = 'smem constant byte address 0x4 - core index']
  #allocation1 [shape = 'u32[144,128]{1,0:T(1,128)}', space=vmem, size = 0x12000, scoped, tag = 'internal scratch']
  %s0 = inlined_call_operand.vmem [shape: f32[32,16], index: 0, kind: input, shape index: {}]
  %s1 = inlined_call_operand.vmem [shape: f32[16,82], index: 1, kind: input, shape index: {}]
  %s2 = inlined_call_operand.vmem [shape: f32[1,64], index: 2, kind: input, shape index: {}]
  %s3 = inlined_call_operand.vmem [shape: f32[32,60], index: 3, kind: output, shape index: {}]
  %s4 = sld [smem:[#allocation0]]
  $region22: #{hstasnet_forward.17} parent=0
    _
  %s6 = ssub.s32 1, %s4
  %s7 = scalar_select 0, %s6, %s4
  // Predicated region
  $region2: #{hstasnet_forward.17} parent=0 // pred_check
    _
  $region3: #{hstasnet_forward.17} parent=0 // pred_check_branch
    %9 = sbr.rel (0) target = $region5
  $region4: #{hstasnet_forward.17} parent=0 // pred_region
    _
  $region5: #{hstasnet_forward.17} parent=0 // pred_fallthru
    _
  // Predicated region
  $region6: #{hstasnet_forward.17} parent=0 // pred_check
    _
  $region7: #{hstasnet_forward.17} parent=0 // pred_check_branch
    %11 = sbr.rel (0) target = $region9
  $region8: #{hstasnet_forward.17} parent=0 // pred_region
    _
  $region9: #{hstasnet_forward.17} parent=0 // pred_fallthru
    _
  // Predicated region
  $region10: #{hstasnet_forward.17} parent=0 // pred_check
    _
  $region11: #{hstasnet_forward.17} parent=0 // pred_check_branch
    %13 = sbr.rel (0) target = $region13
  $region12: #{hstasnet_forward.17} parent=0 // pred_region
    _
  $region13: #{hstasnet_forward.17} parent=0 // pred_fallthru
    _
  %v15 = vld [vmem:[%s0] sm:$0xff]
  %v16 = vld [vmem:[%s0 + $0x8] sm:$0xff]
  %v17 = vld [vmem:[%s0 + $0x10] sm:$0xff]
  %v18 = vld [vmem:[%s0 + $0x18] sm:$0xff]
  %v19 = vpack.c.bf16 %v16, %v15
  %v20 = vpack.c.bf16 %v18, %v17
  %v21 = vld [vmem:[%s1] sm:$0xff]
  %v22 = vld [vmem:[%s1 + $0x8] sm:$0xff]
  %v23 = vpack.c.bf16 %v22, %v21
  %vm24 = vcmask 130048
  %v26 = vsel %vm24, %v19, 0
  %v29 = vsel %vm24, %v20, 0
  %31 = vmatprep.subr.bf16.mxu0 0
  %32 = vmatpush1.bf16.msra.mxu0 0
  %33 = vmatprep.subr.bf16.mxu0 0
  %34 = vmatpush1.bf16.msra.mxu0 0
  %35 = vmatprep.subr.bf16.mxu0 0
  %36 = vmatpush1.bf16.msra.mxu0 0
  %37 = vmatprep.subr.bf16.mxu0 0
  %38 = vmatpush1.bf16.msra.mxu0 0
  %39 = vmatprep.subr.bf16.mxu0 0
  %40 = vmatpush1.bf16.msra.mxu0 0
  %41 = vmatprep.subr.bf16.mxu0 0
  %42 = vmatpush1.bf16.msra.mxu0 0
  %43 = vmatprep.subr.bf16.mxu0 0
  %44 = vmatpush1.bf16.msra.mxu0 0
  %45 = vmatprep.subr.bf16.mxu0 0
  %46 = vmatpush1.bf16.msra.mxu0 %v23
  %47 = vmatprep.subr.bf16.mxu0 0
  %48 = vmatpush2.bf16.msra.mxu0 0
  %49 = vmatprep.subr.bf16.mxu0 0
  %50 = vmatpush2.bf16.msra.mxu0 0
  %51 = vmatprep.subr.bf16.mxu0 0
  %52 = vmatpush2.bf16.msra.mxu0 0
  %53 = vmatprep.subr.bf16.mxu0 0
  %54 = vmatpush2.bf16.msra.mxu0 0
  %55 = vmatprep.subr.bf16.mxu0 0
  %56 = vmatpush2.bf16.msra.mxu0 0
  %57 = vmatprep.subr.bf16.mxu0 0
  %58 = vmatpush2.bf16.msra.mxu0 0
  %59 = vmatprep.subr.bf16.mxu0 0
  %60 = vmatpush2.bf16.msra.mxu0 0
  %61 = vmatprep.subr.bf16.mxu0 0
  %62 = vmatpush2.bf16.msra.mxu0 0
  %63 = vmatprep.mubr.bf16.mxu0 0
  %64 = vmatmul.mubr.bf16.gmra.mxu0 %v26
  %v65 = vpop.f32.mrf.mxu0
  %v66 = vadd.f32 0.0, %v65
  %v67 = vpop.f32.mrf.mxu0
  %v68 = vpop.f32.mrf.mxu0
  %v69 = vadd.f32 0.0, %v68
  %v70 = vpop.f32.mrf.mxu0
  %71 = vmatprep.mubr.bf16.mxu0 0
  %72 = vmatmul.mubr.bf16.gmra.mxu0 %v29
  %v73 = vpop.f32.mrf.mxu0
  %v74 = vadd.f32 0.0, %v73
  %v75 = vpop.f32.mrf.mxu0
  %v76 = vpop.f32.mrf.mxu0
  %v77 = vadd.f32 0.0, %v76
  %v78 = vpop.f32.mrf.mxu0
  %79 = vdwg.mxu0
  %v80 = vmul.f32 %v15, %v15
  %v81 = vmul.f32 %v16, %v16
  %v82 = vmul.f32 %v17, %v17
  %v83 = vmul.f32 %v18, %v18
  %v84 = vsel %vm24, %v80, 0.0
  %85 = vadd.xlane.f32.xlu0 %v84
  %v86 = vpop.xlane.xlu0 %85
  %v87 = vsel %vm24, %v81, 0.0
  %88 = vadd.xlane.f32.xlu0 %v87
  %v89 = vpop.xlane.xlu0 %88
  %v90 = vsel %vm24, %v82, 0.0
  %91 = vadd.xlane.f32.xlu0 %v90
  %v92 = vpop.xlane.xlu0 %91
  %v93 = vsel %vm24, %v83, 0.0
  %94 = vadd.xlane.f32.xlu0 %v93
  %v95 = vpop.xlane.xlu0 %94
  %v96 = vadd.f32 %v86, 1e-08
  %v97 = vadd.f32 %v89, 1e-08
  %v98 = vadd.f32 %v92, 1e-08
  %v99 = vadd.f32 %v95, 1e-08
  %v100 = vrsqrt.pop %v96
  %v101 = vmul.f32 %v96, %v100
  %vm102 = vcmp.eq.f32.partialorder %v96, inf
  %v103 = vsel %vm102, %v96, %v101
  %vm104 = vcmp.eq.f32.partialorder %v96, 0.0
  %v105 = vand.u32 %v96, 2147483648
  %v106 = vsel %vm104, %v105, %v103
  %v107 = vrsqrt.pop %v97
  %v108 = vmul.f32 %v97, %v107
  %vm109 = vcmp.eq.f32.partialorder %v97, inf
  %v110 = vsel %vm109, %v97, %v108
  %vm111 = vcmp.eq.f32.partialorder %v97, 0.0
  %v112 = vand.u32 %v97, 2147483648
  %v113 = vsel %vm111, %v112, %v110
  %v114 = vrsqrt.pop %v98
  %v115 = vmul.f32 %v98, %v114
  %vm116 = vcmp.eq.f32.partialorder %v98, inf
  %v117 = vsel %vm116, %v98, %v115
  %vm118 = vcmp.eq.f32.partialorder %v98, 0.0
  %v119 = vand.u32 %v98, 2147483648
  %v120 = vsel %vm118, %v119, %v117
  %v121 = vrsqrt.pop %v99
  %v122 = vmul.f32 %v99, %v121
  %vm123 = vcmp.eq.f32.partialorder %v99, inf
  %v124 = vsel %vm123, %v99, %v122
  %vm125 = vcmp.eq.f32.partialorder %v99, 0.0
  %v126 = vand.u32 %v99, 2147483648
  %v127 = vsel %vm125, %v126, %v124
  %v128 = vrcp.pop %v106
  %v129 = vrcp.pop %v113
  %v130 = vrcp.pop %v120
  %v131 = vrcp.pop %v127
  %v132 = vmul.f32 %v66, %v128
  %v133 = vmul.f32 %v69, %v129
  %v134 = vmul.f32 %v74, %v130
  %v135 = vmul.f32 %v77, %v131
  %v136 = vld [vmem:[%s2] sm:$0x1]
  %v138 = vlaneseq
  %v139 = vshrl.u32 %v138, 7
  %v140 = vsub.s32 0, %v139
  %v141 = vrot.slane %v136, %v140
  %v143 = vadd.f32 %v132, %v141
  %v144 = vadd.f32 %v133, %v141
  %v145 = vadd.f32 %v134, %v141
  %v146 = vadd.f32 %v135, %v141
  %v147 = vmax.f32 %v143, 0.0
  %v148 = vmax.f32 %v144, 0.0
  %v149 = vmax.f32 %v145, 0.0
  %v150 = vmax.f32 %v146, 0.0
  %v151 = vxor.u32 %v143, 2147483648
  %v152 = vxor.u32 %v144, 2147483648
  %v153 = vxor.u32 %v145, 2147483648
  %v154 = vxor.u32 %v146, 2147483648
  %v155 = vmul.f32 %v151, 1.442695
  %v156 = vpow.pop %v155
  %v157 = vmul.f32 %v152, 1.442695
  %v158 = vpow.pop %v157
  %v159 = vmul.f32 %v153, 1.442695
  %v160 = vpow.pop %v159
  %v161 = vmul.f32 %v154, 1.442695
  %v162 = vpow.pop %v161
  %v163 = vadd.f32 %v156, 1.0
  %v164 = vadd.f32 %v158, 1.0
  %v165 = vadd.f32 %v160, 1.0
  %v166 = vadd.f32 %v162, 1.0
  %v167 = vrcp.pop %v163
  %v168 = vmul.f32 1.0, %v167
  %v169 = vrcp.pop %v164
  %v170 = vmul.f32 1.0, %v169
  %v171 = vrcp.pop %v165
  %v172 = vmul.f32 1.0, %v171
  %v173 = vrcp.pop %v166
  %v174 = vmul.f32 1.0, %v173
  %179 = vrot.lane.b32.xlu0 %v168, 96
  %v180 = vpop.permute.xlu0 %179
  %181 = vrot.lane.b32.xlu0 %v170, 96
  %v182 = vpop.permute.xlu0 %181
  %183 = vrot.lane.b32.xlu0 %v172, 96
  %v184 = vpop.permute.xlu0 %183
  %185 = vrot.lane.b32.xlu0 %v174, 96
  %v186 = vpop.permute.xlu0 %185
  %v191 = vmul.f32 %v147, %v180
  %v192 = vmul.f32 %v148, %v182
  %v193 = vmul.f32 %v149, %v184
  %v194 = vmul.f32 %v150, %v186
  %v195 = vmul.f32 %v66, %v66
  %v196 = vmul.f32 %v69, %v69
  %v197 = vmul.f32 %v74, %v74
  %v198 = vmul.f32 %v77, %v77
  %203 = vrot.lane.b32.xlu0 %v195, 119
  %v204 = vpop.permute.xlu0 %203
  %205 = vrot.lane.b32.xlu0 %v196, 119
  %v206 = vpop.permute.xlu0 %205
  %207 = vrot.lane.b32.xlu0 %v197, 119
  %v208 = vpop.permute.xlu0 %207
  %209 = vrot.lane.b32.xlu0 %v198, 119
  %v210 = vpop.permute.xlu0 %209
  %v215 = vadd.f32 %v195, %v204
  %v216 = vadd.f32 %v196, %v206
  %v217 = vadd.f32 %v197, %v208
  %v218 = vadd.f32 %v198, %v210
  %v219 = vrsqrt.pop %v215
  %v220 = vmul.f32 %v215, %v219
  %vm221 = vcmp.eq.f32.partialorder %v215, inf
  %v222 = vsel %vm221, %v215, %v220
  %vm223 = vcmp.eq.f32.partialorder %v215, 0.0
  %v224 = vand.u32 %v215, 2147483648
  %v225 = vsel %vm223, %v224, %v222
  %v226 = vrsqrt.pop %v216
  %v227 = vmul.f32 %v216, %v226
  %vm228 = vcmp.eq.f32.partialorder %v216, inf
  %v229 = vsel %vm228, %v216, %v227
  %vm230 = vcmp.eq.f32.partialorder %v216, 0.0
  %v231 = vand.u32 %v216, 2147483648
  %v232 = vsel %vm230, %v231, %v229
  %v233 = vrsqrt.pop %v217
  %v234 = vmul.f32 %v217, %v233
  %vm235 = vcmp.eq.f32.partialorder %v217, inf
  %v236 = vsel %vm235, %v217, %v234
  %vm237 = vcmp.eq.f32.partialorder %v217, 0.0
  %v238 = vand.u32 %v217, 2147483648
  %v239 = vsel %vm237, %v238, %v236
  %v240 = vrsqrt.pop %v218
  %v241 = vmul.f32 %v218, %v240
  %vm242 = vcmp.eq.f32.partialorder %v218, inf
  %v243 = vsel %vm242, %v218, %v241
  %vm244 = vcmp.eq.f32.partialorder %v218, 0.0
  %v245 = vand.u32 %v218, 2147483648
  %v246 = vsel %vm244, %v245, %v243
  %v247 = vmax.f32 %v225, 1e-08
  %v248 = vmax.f32 %v232, 1e-08
  %v249 = vmax.f32 %v239, 1e-08
  %v250 = vmax.f32 %v246, 1e-08
  %v251 = vrcp.pop %v247
  %v252 = vrcp.pop %v248
  %v253 = vrcp.pop %v249
  %v254 = vrcp.pop %v250
  %vm255 = vcmask 261120
  %256 = vst.msk [vmem:[%s3] sm:$0xff] %vm255, %v191
  %257 = vst.msk [vmem:[%s3 + $0x8] sm:$0xff] %vm255, %v192
  %258 = vst.msk [vmem:[%s3 + $0x10] sm:$0xff] %vm255, %v193
  %259 = vst.msk [vmem:[%s3 + $0x18] sm:$0xff] %vm255, %v194
  %264 = vrot.lane.b32.xlu0 %v225, 96
  %v265 = vpop.permute.xlu0 %264
  %266 = vrot.lane.b32.xlu0 %v232, 96
  %v267 = vpop.permute.xlu0 %266
  %268 = vrot.lane.b32.xlu0 %v239, 96
  %v269 = vpop.permute.xlu0 %268
  %270 = vrot.lane.b32.xlu0 %v246, 96
  %v271 = vpop.permute.xlu0 %270
  %vm276 = vcmask 335104
  %277 = vst.msk [vmem:[%s3] sm:$0xff] %vm276, %v265
  %278 = vst.msk [vmem:[%s3 + $0x8] sm:$0xff] %vm276, %v267
  %279 = vst.msk [vmem:[%s3 + $0x10] sm:$0xff] %vm276, %v269
  %280 = vst.msk [vmem:[%s3 + $0x18] sm:$0xff] %vm276, %v271
  %v281 = vmul.f32 %v66, %v251
  %v282 = vmul.f32 %v69, %v252
  %v283 = vmul.f32 %v74, %v253
  %v284 = vmul.f32 %v77, %v254
  %289 = vrot.lane.b32.xlu0 %v281, 105
  %v290 = vpop.permute.xlu0 %289
  %291 = vrot.lane.b32.xlu0 %v282, 105
  %v292 = vpop.permute.xlu0 %291
  %293 = vrot.lane.b32.xlu0 %v283, 105
  %v294 = vpop.permute.xlu0 %293
  %295 = vrot.lane.b32.xlu0 %v284, 105
  %v296 = vpop.permute.xlu0 %295
  %vm301 = vcmask 408904
  %302 = vst.msk [vmem:[%s3] sm:$0xff] %vm301, %v290
  %303 = vst.msk [vmem:[%s3 + $0x8] sm:$0xff] %vm301, %v292
  %304 = vst.msk [vmem:[%s3 + $0x10] sm:$0xff] %vm301, %v294
  %305 = vst.msk [vmem:[%s3 + $0x18] sm:$0xff] %vm301, %v296
  %310 = vrot.lane.b32.xlu0 %v251, 9
  %v311 = vpop.permute.xlu0 %310
  %312 = vrot.lane.b32.xlu0 %v252, 9
  %v313 = vpop.permute.xlu0 %312
  %314 = vrot.lane.b32.xlu0 %v253, 9
  %v315 = vpop.permute.xlu0 %314
  %316 = vrot.lane.b32.xlu0 %v254, 9
  %v317 = vpop.permute.xlu0 %316
  %v322 = vmul.f32 %v66, %v311
  %v323 = vmul.f32 %v69, %v313
  %v324 = vmul.f32 %v74, %v315
  %v325 = vmul.f32 %v77, %v317
  %330 = vrot.lane.b32.xlu0 %v322, 105
  %v331 = vpop.permute.xlu0 %330
  %332 = vrot.lane.b32.xlu0 %v323, 105
  %v333 = vpop.permute.xlu0 %332
  %334 = vrot.lane.b32.xlu0 %v324, 105
  %v335 = vpop.permute.xlu0 %334
  %336 = vrot.lane.b32.xlu0 %v325, 105
  %v337 = vpop.permute.xlu0 %336
  %vm342 = vcmask 482704
  %343 = vst.msk [vmem:[%s3] sm:$0xff] %vm342, %v331
  %344 = vst.msk [vmem:[%s3 + $0x8] sm:$0xff] %vm342, %v333
  %345 = vst.msk [vmem:[%s3 + $0x10] sm:$0xff] %vm342, %v335
  %346 = vst.msk [vmem:[%s3 + $0x18] sm:$0xff] %vm342, %v337
  %vm347 = vcmask 490968
  %348 = vst.msk [vmem:[%s3] sm:$0xff] %vm347, %v106
  %349 = vst.msk [vmem:[%s3 + $0x8] sm:$0xff] %vm347, %v113
  %350 = vst.msk [vmem:[%s3 + $0x10] sm:$0xff] %vm347, %v120
  %351 = vst.msk [vmem:[%s3 + $0x18] sm:$0xff] %vm347, %v127
  // Predicated region
  $region14: #{hstasnet_forward.17} parent=0 // pred_check
    _
  $region15: #{hstasnet_forward.17} parent=0 // pred_check_branch
    %353 = sbr.rel (0) target = $region17
  $region16: #{hstasnet_forward.17} parent=0 // pred_region
    _
  $region17: #{hstasnet_forward.17} parent=0 // pred_fallthru
    _
  // Predicated region
  $region18: #{hstasnet_forward.17} parent=0 // pred_check
    _
  $region19: #{hstasnet_forward.17} parent=0 // pred_check_branch
    %355 = sbr.rel (0) target = $region21
  $region20: #{hstasnet_forward.17} parent=0 // pred_region
    _
  $region21: #{hstasnet_forward.17} parent=0 // pred_fallthru
    _

// kernel: hstasnet_forward.21
$region0: #{hstasnet_forward.21}
  #allocation0 [shape = 'u32[]', space=smem, size = 0x4, offset = 0x4, fixed_abs, tag = 'smem constant byte address 0x4 - core index']
  #allocation1 [shape = 'u32[144,128]{1,0:T(1,128)}', space=vmem, size = 0x12000, scoped, tag = 'internal scratch']
  #allocation2 [shape = 'f32[2,32]{1,0:T(2,128)}', space=vmem, size = 0x400, scoped, tag = 'scratch operand']
  #allocation3 [shape = 'f32[2,32]{1,0:T(2,128)}', space=vmem, size = 0x400, scoped, tag = 'scratch operand']
  %s0 = inlined_call_operand.vmem [shape: f32[7,2,128], index: 0, kind: input, shape index: {}]
  %s1 = inlined_call_operand.vmem [shape: f32[32,128], index: 1, kind: input, shape index: {}]
  %s2 = inlined_call_operand.vmem [shape: f32[7,2,32], index: 2, kind: output, shape index: {}]
  %s3 = sld [smem:[#allocation0]]
  $region29: #{hstasnet_forward.21} parent=0
    _
  %s5 = ssub.s32 1, %s3
  %s6 = scalar_select 0, %s5, %s3
  // Predicated region
  $region2: #{hstasnet_forward.21} parent=0 // pred_check
    _
  $region3: #{hstasnet_forward.21} parent=0 // pred_check_branch
    %8 = sbr.rel (0) target = $region5
  $region4: #{hstasnet_forward.21} parent=0 // pred_region
    _
  $region5: #{hstasnet_forward.21} parent=0 // pred_fallthru
    _
  // Predicated region
  $region6: #{hstasnet_forward.21} parent=0 // pred_check
    _
  $region7: #{hstasnet_forward.21} parent=0 // pred_check_branch
    %10 = sbr.rel (0) target = $region9
  $region8: #{hstasnet_forward.21} parent=0 // pred_region
    _
  $region9: #{hstasnet_forward.21} parent=0 // pred_fallthru
    _
  %p12 = scmp.eq.s32.totalorder 0, 0
  // Predicated region
  $region10: #{hstasnet_forward.21} parent=0 // pred_check
    %p13 = pneg %p12
  $region11: #{hstasnet_forward.21} parent=0 // pred_check_branch
    %15 = sbr.rel (%p13) target = $region13
  $region12: #{hstasnet_forward.21} parent=0 // pred_region
    %vm16 = vcmask 254976
    %17 = vst.msk [vmem:[#allocation2] sm:$0x3] %vm16, 0.0
    %18 = vst.msk [vmem:[#allocation3] sm:$0x3] %vm16, 0.0
  $region13: #{hstasnet_forward.21} parent=0 // pred_fallthru
    _
  %v19 = vld [vmem:[%s1] sm:$0xff]
  %v20 = vld [vmem:[%s1 + $0x8] sm:$0xff]
  %v21 = vld [vmem:[%s1 + $0x10] sm:$0xff]
  %v22 = vld [vmem:[%s1 + $0x18] sm:$0xff]
  %v23 = vpack.c.bf16 %v20, %v19
  %v24 = vpack.c.bf16 %v22, %v21
  %v25 = vld [vmem:[#allocation2] sm:$0x3]
  %v26 = vld [vmem:[#allocation3] sm:$0x3]
  loop: start=0, step=1, limit=7
  $region14: #{hstasnet_forward.21} parent=0 // loop_pre_header
    _
  $region15: #{hstasnet_forward.21} parent=0 // loop_header
    %s28 = sphi 0, %s32
    %p29 = scmp.ge.s32.totalorder %s28, 7
    %v33 = vphi %v25, %v114
    %v34 = vphi %v26, %v121
  $region16: #{hstasnet_forward.21} parent=0 // loop_header_branch
    %31 = sbr.rel (%p29) target = $region20
  $region17: #{hstasnet_forward.21} parent=0 // loop_body
    %s35 = smul.u32 %s28, 2
    %s36 = scalar_lea.vmem %s0, %s35
    %v37 = vld [vmem:[%s36] sm:$0x3]
    %v38 = vpack.c.bf16 %v33, %v33
    %vm39 = vcmask 261120
    %v41 = vsel %vm39, %v38, 0
    %43 = vmatprep.subr.bf16.mxu0 0
    %44 = vmatpush1.bf16.msra.mxu0 0
    %45 = vmatprep.subr.bf16.mxu0 0
    %46 = vmatpush1.bf16.msra.mxu0 0
    %47 = vmatprep.subr.bf16.mxu0 0
    %48 = vmatpush1.bf16.msra.mxu0 0
    %49 = vmatprep.subr.bf16.mxu0 0
    %50 = vmatpush1.bf16.msra.mxu0 0
    %51 = vmatprep.subr.bf16.mxu0 0
    %52 = vmatpush1.bf16.msra.mxu0 0
    %53 = vmatprep.subr.bf16.mxu0 0
    %54 = vmatpush1.bf16.msra.mxu0 0
    %55 = vmatprep.subr.bf16.mxu0 0
    %56 = vmatpush1.bf16.msra.mxu0 %v24
    %57 = vmatprep.subr.bf16.mxu0 0
    %58 = vmatpush1.bf16.msra.mxu0 %v23
    %59 = vmatprep.subr.bf16.mxu0 0
    %60 = vmatpush2.bf16.msra.mxu0 0
    %61 = vmatprep.subr.bf16.mxu0 0
    %62 = vmatpush2.bf16.msra.mxu0 0
    %63 = vmatprep.subr.bf16.mxu0 0
    %64 = vmatpush2.bf16.msra.mxu0 0
    %65 = vmatprep.subr.bf16.mxu0 0
    %66 = vmatpush2.bf16.msra.mxu0 0
    %67 = vmatprep.subr.bf16.mxu0 0
    %68 = vmatpush2.bf16.msra.mxu0 0
    %69 = vmatprep.subr.bf16.mxu0 0
    %70 = vmatpush2.bf16.msra.mxu0 0
    %71 = vmatprep.subr.bf16.mxu0 0
    %72 = vmatpush2.bf16.msra.mxu0 0
    %73 = vmatprep.subr.bf16.mxu0 0
    %74 = vmatpush2.bf16.msra.mxu0 0
    %75 = vmatprep.mubr.bf16.mxu0 0
    %76 = vmatmul.mubr.bf16.gmra.mxu0 %v41
    %v77 = vpop.f32.mrf.mxu0
    %v78 = vadd.f32 0.0, %v77
    %v79 = vpop.f32.mrf.mxu0
    %v80 = vpop.f32.mrf.mxu0
    %v81 = vpop.f32.mrf.mxu0
    %82 = vdwg.mxu0
    %v83 = vadd.f32 %v37, %v78
    %v84 = vxor.u32 %v83, 2147483648
    %v85 = vmul.f32 %v84, 1.442695
    %v86 = vpow.pop %v85
    %v87 = vadd.f32 %v86, 1.0
    %v88 = vrcp.pop %v87
    %v89 = vmul.f32 1.0, %v88
    %v90 = vtanh.pop %v83
    %92 = vrot.lane.b32.xlu0 %v34, 32
    %v93 = vpop.permute.xlu0 %92
    %v95 = vmul.f32 %v89, %v93
    %97 = vrot.lane.b32.xlu0 %v90, 64
    %v98 = vpop.permute.xlu0 %97
    %v100 = vmul.f32 %v89, %v98
    %102 = vrot.lane.b32.xlu0 %v100, 32
    %v103 = vpop.permute.xlu0 %102
    %v105 = vadd.f32 %v95, %v103
    %v106 = vtanh.pop %v105
    %108 = vrot.lane.b32.xlu0 %v106, 64
    %v109 = vpop.permute.xlu0 %108
    %v111 = vmul.f32 %v89, %v109
    %113 = vrot.lane.b32.xlu0 %v111, 32
    %v114 = vpop.permute.xlu0 %113
    %s116 = scalar_lea.vmem %s2, %s35
    %vm117 = vcmask 254976
    %118 = vst.msk [vmem:[%s116] sm:$0x3] %vm117, %v114
    %120 = vrot.lane.b32.xlu0 %v105, 96
    %v121 = vpop.permute.xlu0 %120
  $region18: #{hstasnet_forward.21} parent=0 // loop_footer
    %s32 = sadd.s32 1, %s28
  $region19: #{hstasnet_forward.21} parent=0 // loop_footer_branch
    %27 = sbr.rel target = $region15
  $region20: #{hstasnet_forward.21} parent=0 // loop_exit
    _
  %vm123 = vcmask 254976
  %124 = vst.msk [vmem:[#allocation2] sm:$0x3] %vm123, %v33
  %125 = vst.msk [vmem:[#allocation3] sm:$0x3] %vm123, %v34
  // Predicated region
  $region21: #{hstasnet_forward.21} parent=0 // pred_check
    _
  $region22: #{hstasnet_forward.21} parent=0 // pred_check_branch
    %127 = sbr.rel (0) target = $region24
  $region23: #{hstasnet_forward.21} parent=0 // pred_region
    _
  $region24: #{hstasnet_forward.21} parent=0 // pred_fallthru
    _
  // Predicated region
  $region25: #{hstasnet_forward.21} parent=0 // pred_check
    _
  $region26: #{hstasnet_forward.21} parent=0 // pred_check_branch
    %129 = sbr.rel (0) target = $region28
  $region27: #{hstasnet_forward.21} parent=0 // pred_region
    _
  $region28: #{hstasnet_forward.21} parent=0 // pred_fallthru
    _

// kernel: hstasnet_forward.20
$region0: #{hstasnet_forward.20}
  #allocation0 [shape = 'u32[]', space=smem, size = 0x4, offset = 0x4, fixed_abs, tag = 'smem constant byte address 0x4 - core index']
  #allocation1 [shape = 'u32[144,128]{1,0:T(1,128)}', space=vmem, size = 0x12000, scoped, tag = 'internal scratch']
  %s0 = inlined_call_operand.vmem [shape: f32[16,18], index: 0, kind: input, shape index: {}]
  %s1 = inlined_call_operand.vmem [shape: f32[18,128], index: 1, kind: input, shape index: {}]
  %s2 = inlined_call_operand.vmem [shape: f32[1,128], index: 2, kind: input, shape index: {}]
  %s3 = inlined_call_operand.vmem [shape: f32[16,128], index: 3, kind: output, shape index: {}]
  %s4 = sld [smem:[#allocation0]]
  $region22: #{hstasnet_forward.20} parent=0
    _
  %s6 = ssub.s32 1, %s4
  %s7 = scalar_select 0, %s6, %s4
  // Predicated region
  $region2: #{hstasnet_forward.20} parent=0 // pred_check
    _
  $region3: #{hstasnet_forward.20} parent=0 // pred_check_branch
    %9 = sbr.rel (0) target = $region5
  $region4: #{hstasnet_forward.20} parent=0 // pred_region
    _
  $region5: #{hstasnet_forward.20} parent=0 // pred_fallthru
    _
  // Predicated region
  $region6: #{hstasnet_forward.20} parent=0 // pred_check
    _
  $region7: #{hstasnet_forward.20} parent=0 // pred_check_branch
    %11 = sbr.rel (0) target = $region9
  $region8: #{hstasnet_forward.20} parent=0 // pred_region
    _
  $region9: #{hstasnet_forward.20} parent=0 // pred_fallthru
    _
  // Predicated region
  $region10: #{hstasnet_forward.20} parent=0 // pred_check
    _
  $region11: #{hstasnet_forward.20} parent=0 // pred_check_branch
    %13 = sbr.rel (0) target = $region13
  $region12: #{hstasnet_forward.20} parent=0 // pred_region
    _
  $region13: #{hstasnet_forward.20} parent=0 // pred_fallthru
    _
  %v15 = vld [vmem:[%s0] sm:$0xff]
  %v16 = vld [vmem:[%s0 + $0x8] sm:$0xff]
  %v17 = vpack.c.bf16 %v16, %v15
  %v18 = vld [vmem:[%s1] sm:$0xff]
  %v19 = vld [vmem:[%s1 + $0x8] sm:$0xff]
  %v20 = vld [vmem:[%s1 + $0x10] sm:$0x3]
  %v21 = vpack.c.bf16 %v19, %v18
  %v22 = vpack.c.bf16 %v20, %v20
  %v23 = vld [vmem:[%s2] sm:$0x1]
  %v25 = vlaneseq
  %v26 = vshrl.u32 %v25, 7
  %v27 = vsub.s32 0, %v26
  %v28 = vrot.slane %v23, %v27
  %vm30 = vcmask 146432
  %v32 = vsel %vm30, %v17, 0
  %vm34 = vcmask 1040384
  %v36 = vsel %vm34, %v22, 0
  %38 = vmatprep.subr.bf16.mxu0 0
  %39 = vmatpush1.bf16.msra.mxu0 0
  %40 = vmatprep.subr.bf16.mxu0 0
  %41 = vmatpush1.bf16.msra.mxu0 0
  %42 = vmatprep.subr.bf16.mxu0 0
  %43 = vmatpush1.bf16.msra.mxu0 0
  %44 = vmatprep.subr.bf16.mxu0 0
  %45 = vmatpush1.bf16.msra.mxu0 0
  %46 = vmatprep.subr.bf16.mxu0 0
  %47 = vmatpush1.bf16.msra.mxu0 0
  %48 = vmatprep.subr.bf16.mxu0 0
  %49 = vmatpush1.bf16.msra.mxu0 0
  %50 = vmatprep.subr.bf16.mxu0 0
  %51 = vmatpush1.bf16.msra.mxu0 %v36
  %52 = vmatprep.subr.bf16.mxu0 0
  %53 = vmatpush1.bf16.msra.mxu0 %v21
  %54 = vmatprep.subr.bf16.mxu0 0
  %55 = vmatpush2.bf16.msra.mxu0 0
  %56 = vmatprep.subr.bf16.mxu0 0
  %57 = vmatpush2.bf16.msra.mxu0 0
  %58 = vmatprep.subr.bf16.mxu0 0
  %59 = vmatpush2.bf16.msra.mxu0 0
  %60 = vmatprep.subr.bf16.mxu0 0
  %61 = vmatpush2.bf16.msra.mxu0 0
  %62 = vmatprep.subr.bf16.mxu0 0
  %63 = vmatpush2.bf16.msra.mxu0 0
  %64 = vmatprep.subr.bf16.mxu0 0
  %65 = vmatpush2.bf16.msra.mxu0 0
  %66 = vmatprep.subr.bf16.mxu0 0
  %67 = vmatpush2.bf16.msra.mxu0 0
  %68 = vmatprep.subr.bf16.mxu0 0
  %69 = vmatpush2.bf16.msra.mxu0 0
  %70 = vmatprep.mubr.bf16.mxu0 0
  %71 = vmatmul.mubr.bf16.gmra.mxu0 %v32
  %v72 = vpop.f32.mrf.mxu0
  %v73 = vadd.f32 %v28, %v72
  %v74 = vpop.f32.mrf.mxu0
  %v75 = vpop.f32.mrf.mxu0
  %v76 = vadd.f32 %v28, %v75
  %v77 = vpop.f32.mrf.mxu0
  %78 = vdwg.mxu0
  %79 = vst [vmem:[%s3] sm:$0xff] %v73
  %80 = vst [vmem:[%s3 + $0x8] sm:$0xff] %v76
  // Predicated region
  $region14: #{hstasnet_forward.20} parent=0 // pred_check
    _
  $region15: #{hstasnet_forward.20} parent=0 // pred_check_branch
    %82 = sbr.rel (0) target = $region17
  $region16: #{hstasnet_forward.20} parent=0 // pred_region
    _
  $region17: #{hstasnet_forward.20} parent=0 // pred_fallthru
    _
  // Predicated region
  $region18: #{hstasnet_forward.20} parent=0 // pred_check
    _
  $region19: #{hstasnet_forward.20} parent=0 // pred_check_branch
    %84 = sbr.rel (0) target = $region21
  $region20: #{hstasnet_forward.20} parent=0 // pred_region
    _
  $region21: #{hstasnet_forward.20} parent=0 // pred_fallthru
    _

// kernel: hstasnet_forward.18
$region0: #{hstasnet_forward.18}
  #allocation0 [shape = 'u32[]', space=smem, size = 0x4, offset = 0x4, fixed_abs, tag = 'smem constant byte address 0x4 - core index']
  #allocation1 [shape = 'u32[144,128]{1,0:T(1,128)}', space=vmem, size = 0x12000, scoped, tag = 'internal scratch']
  %s0 = inlined_call_operand.vmem [shape: f32[16,64], index: 0, kind: input, shape index: {}]
  %s1 = inlined_call_operand.vmem [shape: f32[64,128], index: 1, kind: input, shape index: {}]
  %s2 = inlined_call_operand.vmem [shape: f32[1,128], index: 2, kind: input, shape index: {}]
  %s3 = inlined_call_operand.vmem [shape: f32[16,128], index: 3, kind: output, shape index: {}]
  %s4 = sld [smem:[#allocation0]]
  $region22: #{hstasnet_forward.18} parent=0
    _
  %s6 = ssub.s32 1, %s4
  %s7 = scalar_select 0, %s6, %s4
  // Predicated region
  $region2: #{hstasnet_forward.18} parent=0 // pred_check
    _
  $region3: #{hstasnet_forward.18} parent=0 // pred_check_branch
    %9 = sbr.rel (0) target = $region5
  $region4: #{hstasnet_forward.18} parent=0 // pred_region
    _
  $region5: #{hstasnet_forward.18} parent=0 // pred_fallthru
    _
  // Predicated region
  $region6: #{hstasnet_forward.18} parent=0 // pred_check
    _
  $region7: #{hstasnet_forward.18} parent=0 // pred_check_branch
    %11 = sbr.rel (0) target = $region9
  $region8: #{hstasnet_forward.18} parent=0 // pred_region
    _
  $region9: #{hstasnet_forward.18} parent=0 // pred_fallthru
    _
  // Predicated region
  $region10: #{hstasnet_forward.18} parent=0 // pred_check
    _
  $region11: #{hstasnet_forward.18} parent=0 // pred_check_branch
    %13 = sbr.rel (0) target = $region13
  $region12: #{hstasnet_forward.18} parent=0 // pred_region
    _
  $region13: #{hstasnet_forward.18} parent=0 // pred_fallthru
    _
  %v15 = vld [vmem:[%s0] sm:$0xff]
  %v16 = vld [vmem:[%s0 + $0x8] sm:$0xff]
  %v17 = vpack.c.bf16 %v16, %v15
  %v18 = vld [vmem:[%s1] sm:$0xff]
  %v19 = vld [vmem:[%s1 + $0x8] sm:$0xff]
  %v20 = vld [vmem:[%s1 + $0x10] sm:$0xff]
  %v21 = vld [vmem:[%s1 + $0x18] sm:$0xff]
  %v22 = vld [vmem:[%s1 + $0x20] sm:$0xff]
  %v23 = vld [vmem:[%s1 + $0x28] sm:$0xff]
  %v24 = vld [vmem:[%s1 + $0x30] sm:$0xff]
  %v25 = vld [vmem:[%s1 + $0x38] sm:$0xff]
  %v26 = vpack.c.bf16 %v19, %v18
  %v27 = vpack.c.bf16 %v21, %v20
  %v28 = vpack.c.bf16 %v23, %v22
  %v29 = vpack.c.bf16 %v25, %v24
  %v30 = vld [vmem:[%s2] sm:$0x1]
  %v32 = vlaneseq
  %v33 = vshrl.u32 %v32, 7
  %v34 = vsub.s32 0, %v33
  %v35 = vrot.slane %v30, %v34
  %vm37 = vcmask 523264
  %v39 = vsel %vm37, %v17, 0
  %41 = vmatprep.subr.bf16.mxu0 0
  %42 = vmatpush1.bf16.msra.mxu0 0
  %43 = vmatprep.subr.bf16.mxu0 0
  %44 = vmatpush1.bf16.msra.mxu0 0
  %45 = vmatprep.subr.bf16.mxu0 0
  %46 = vmatpush1.bf16.msra.mxu0 0
  %47 = vmatprep.subr.bf16.mxu0 0
  %48 = vmatpush1.bf16.msra.mxu0 0
  %49 = vmatprep.subr.bf16.mxu0 0
  %50 = vmatpush1.bf16.msra.mxu0 %v29
  %51 = vmatprep.subr.bf16.mxu0 0
  %52 = vmatpush1.bf16.msra.mxu0 %v28
  %53 = vmatprep.subr.bf16.mxu0 0
  %54 = vmatpush1.bf16.msra.mxu0 %v27
  %55 = vmatprep.subr.bf16.mxu0 0
  %56 = vmatpush1.bf16.msra.mxu0 %v26
  %57 = vmatprep.subr.bf16.mxu0 0
  %58 = vmatpush2.bf16.msra.mxu0 0
  %59 = vmatprep.subr.bf16.mxu0 0
  %60 = vmatpush2.bf16.msra.mxu0 0
  %61 = vmatprep.subr.bf16.mxu0 0
  %62 = vmatpush2.bf16.msra.mxu0 0
  %63 = vmatprep.subr.bf16.mxu0 0
  %64 = vmatpush2.bf16.msra.mxu0 0
  %65 = vmatprep.subr.bf16.mxu0 0
  %66 = vmatpush2.bf16.msra.mxu0 0
  %67 = vmatprep.subr.bf16.mxu0 0
  %68 = vmatpush2.bf16.msra.mxu0 0
  %69 = vmatprep.subr.bf16.mxu0 0
  %70 = vmatpush2.bf16.msra.mxu0 0
  %71 = vmatprep.subr.bf16.mxu0 0
  %72 = vmatpush2.bf16.msra.mxu0 0
  %73 = vmatprep.mubr.bf16.mxu0 0
  %74 = vmatmul.mubr.bf16.gmra.mxu0 %v39
  %v75 = vpop.f32.mrf.mxu0
  %v76 = vadd.f32 %v35, %v75
  %v77 = vpop.f32.mrf.mxu0
  %v78 = vpop.f32.mrf.mxu0
  %v79 = vadd.f32 %v35, %v78
  %v80 = vpop.f32.mrf.mxu0
  %81 = vdwg.mxu0
  %82 = vst [vmem:[%s3] sm:$0xff] %v76
  %83 = vst [vmem:[%s3 + $0x8] sm:$0xff] %v79
  // Predicated region
  $region14: #{hstasnet_forward.18} parent=0 // pred_check
    _
  $region15: #{hstasnet_forward.18} parent=0 // pred_check_branch
    %85 = sbr.rel (0) target = $region17
  $region16: #{hstasnet_forward.18} parent=0 // pred_region
    _
  $region17: #{hstasnet_forward.18} parent=0 // pred_fallthru
    _
  // Predicated region
  $region18: #{hstasnet_forward.18} parent=0 // pred_check
    _
  $region19: #{hstasnet_forward.18} parent=0 // pred_check_branch
    %87 = sbr.rel (0) target = $region21
  $region20: #{hstasnet_forward.18} parent=0 // pred_region
    _
  $region21: #{hstasnet_forward.18} parent=0 // pred_fallthru
    _

// kernel: hstasnet_forward.22
$region0: #{hstasnet_forward.22}
  #allocation0 [shape = 'u32[]', space=smem, size = 0x4, offset = 0x4, fixed_abs, tag = 'smem constant byte address 0x4 - core index']
  #allocation1 [shape = 'u32[144,128]{1,0:T(1,128)}', space=vmem, size = 0x12000, scoped, tag = 'internal scratch']
  %s0 = inlined_call_operand.vmem [shape: f32[16,64], index: 0, kind: input, shape index: {}]
  %s1 = inlined_call_operand.vmem [shape: f32[64,256], index: 1, kind: input, shape index: {}]
  %s2 = inlined_call_operand.vmem [shape: f32[1,256], index: 2, kind: input, shape index: {}]
  %s3 = inlined_call_operand.vmem [shape: f32[16,256], index: 3, kind: output, shape index: {}]
  %s4 = sld [smem:[#allocation0]]
  $region22: #{hstasnet_forward.22} parent=0
    _
  %s6 = ssub.s32 1, %s4
  %s7 = scalar_select 0, %s6, %s4
  // Predicated region
  $region2: #{hstasnet_forward.22} parent=0 // pred_check
    _
  $region3: #{hstasnet_forward.22} parent=0 // pred_check_branch
    %9 = sbr.rel (0) target = $region5
  $region4: #{hstasnet_forward.22} parent=0 // pred_region
    _
  $region5: #{hstasnet_forward.22} parent=0 // pred_fallthru
    _
  // Predicated region
  $region6: #{hstasnet_forward.22} parent=0 // pred_check
    _
  $region7: #{hstasnet_forward.22} parent=0 // pred_check_branch
    %11 = sbr.rel (0) target = $region9
  $region8: #{hstasnet_forward.22} parent=0 // pred_region
    _
  $region9: #{hstasnet_forward.22} parent=0 // pred_fallthru
    _
  // Predicated region
  $region10: #{hstasnet_forward.22} parent=0 // pred_check
    _
  $region11: #{hstasnet_forward.22} parent=0 // pred_check_branch
    %13 = sbr.rel (0) target = $region13
  $region12: #{hstasnet_forward.22} parent=0 // pred_region
    _
  $region13: #{hstasnet_forward.22} parent=0 // pred_fallthru
    _
  %v15 = vld [vmem:[%s0] sm:$0xff]
  %v16 = vld [vmem:[%s0 + $0x8] sm:$0xff]
  %v17 = vpack.c.bf16 %v16, %v15
  %v18 = vld [vmem:[%s1] sm:$0xff]
  %v19 = vld [vmem:[%s1 + $0x8] sm:$0xff]
  %v20 = vld [vmem:[%s1 + $0x10] sm:$0xff]
  %v21 = vld [vmem:[%s1 + $0x18] sm:$0xff]
  %v22 = vld [vmem:[%s1 + $0x20] sm:$0xff]
  %v23 = vld [vmem:[%s1 + $0x28] sm:$0xff]
  %v24 = vld [vmem:[%s1 + $0x30] sm:$0xff]
  %v25 = vld [vmem:[%s1 + $0x38] sm:$0xff]
  %v26 = vld [vmem:[%s1 + $0x40] sm:$0xff]
  %v27 = vld [vmem:[%s1 + $0x48] sm:$0xff]
  %v28 = vld [vmem:[%s1 + $0x50] sm:$0xff]
  %v29 = vld [vmem:[%s1 + $0x58] sm:$0xff]
  %v30 = vld [vmem:[%s1 + $0x60] sm:$0xff]
  %v31 = vld [vmem:[%s1 + $0x68] sm:$0xff]
  %v32 = vld [vmem:[%s1 + $0x70] sm:$0xff]
  %v33 = vld [vmem:[%s1 + $0x78] sm:$0xff]
  %v34 = vpack.c.bf16 %v20, %v18
  %v35 = vpack.c.bf16 %v21, %v19
  %v36 = vpack.c.bf16 %v24, %v22
  %v37 = vpack.c.bf16 %v25, %v23
  %v38 = vpack.c.bf16 %v28, %v26
  %v39 = vpack.c.bf16 %v29, %v27
  %v40 = vpack.c.bf16 %v32, %v30
  %v41 = vpack.c.bf16 %v33, %v31
  %v42 = vld [vmem:[%s2] sm:$0x3]
  %v44 = vlaneseq
  %v45 = vshrl.u32 %v44, 7
  %v46 = vsub.s32 0, %v45
  %v47 = vrot.slane %v42, %v46
  %v48 = vlaneseq
  %v49 = vshrl.u32 %v48, 7
  %v50 = vsub.s32 1, %v49
  %v51 = vrot.slane %v42, %v50
  %vm54 = vcmask 523264
  %v56 = vsel %vm54, %v17, 0
  %58 = vmatprep.subr.bf16.mxu0 0
  %59 = vmatpush1.bf16.msra.mxu0 0
  %60 = vmatprep.subr.bf16.mxu0 0
  %61 = vmatpush1.bf16.msra.mxu0 0
  %62 = vmatprep.subr.bf16.mxu0 0
  %63 = vmatpush1.bf16.msra.mxu0 0
  %64 = vmatprep.subr.bf16.mxu0 0
  %65 = vmatpush1.bf16.msra.mxu0 0
  %66 = vmatprep.subr.bf16.mxu0 %v41
  %67 = vmatpush1.bf16.msra.mxu0 %v40
  %68 = vmatprep.subr.bf16.mxu0 %v39
  %69 = vmatpush1.bf16.msra.mxu0 %v38
  %70 = vmatprep.subr.bf16.mxu0 %v37
  %71 = vmatpush1.bf16.msra.mxu0 %v36
  %72 = vmatprep.subr.bf16.mxu0 %v35
  %73 = vmatpush1.bf16.msra.mxu0 %v34
  %74 = vmatprep.subr.bf16.mxu0 0
  %75 = vmatpush2.bf16.msra.mxu0 0
  %76 = vmatprep.subr.bf16.mxu0 0
  %77 = vmatpush2.bf16.msra.mxu0 0
  %78 = vmatprep.subr.bf16.mxu0 0
  %79 = vmatpush2.bf16.msra.mxu0 0
  %80 = vmatprep.subr.bf16.mxu0 0
  %81 = vmatpush2.bf16.msra.mxu0 0
  %82 = vmatprep.subr.bf16.mxu0 0
  %83 = vmatpush2.bf16.msra.mxu0 0
  %84 = vmatprep.subr.bf16.mxu0 0
  %85 = vmatpush2.bf16.msra.mxu0 0
  %86 = vmatprep.subr.bf16.mxu0 0
  %87 = vmatpush2.bf16.msra.mxu0 0
  %88 = vmatprep.subr.bf16.mxu0 0
  %89 = vmatpush2.bf16.msra.mxu0 0
  %90 = vmatprep.mubr.bf16.mxu0 0
  %91 = vmatmul.mubr.bf16.gmra.mxu0 %v56
  %v92 = vpop.f32.mrf.mxu0
  %v93 = vadd.f32 %v47, %v92
  %v94 = vpop.f32.mrf.mxu0
  %v95 = vadd.f32 %v51, %v94
  %v96 = vpop.f32.mrf.mxu0
  %v97 = vadd.f32 %v47, %v96
  %v98 = vpop.f32.mrf.mxu0
  %v99 = vadd.f32 %v51, %v98
  %100 = vdwg.mxu0
  %101 = vst [vmem:[%s3] sm:$0xff] %v93
  %102 = vst [vmem:[%s3 + $0x8] sm:$0xff] %v95
  %103 = vst [vmem:[%s3 + $0x10] sm:$0xff] %v97
  %104 = vst [vmem:[%s3 + $0x18] sm:$0xff] %v99
  // Predicated region
  $region14: #{hstasnet_forward.22} parent=0 // pred_check
    _
  $region15: #{hstasnet_forward.22} parent=0 // pred_check_branch
    %106 = sbr.rel (0) target = $region17
  $region16: #{hstasnet_forward.22} parent=0 // pred_region
    _
  $region17: #{hstasnet_forward.22} parent=0 // pred_fallthru
    _
  // Predicated region
  $region18: #{hstasnet_forward.22} parent=0 // pred_check
    _
  $region19: #{hstasnet_forward.22} parent=0 // pred_check_branch
    %108 = sbr.rel (0) target = $region21
  $region20: #{hstasnet_forward.22} parent=0 // pred_region
    _
  $region21: #{hstasnet_forward.22} parent=0 // pred_fallthru
    _

// kernel: hstasnet_forward.27
$region0: #{hstasnet_forward.27}
  #allocation0 [shape = 'u32[]', space=smem, size = 0x4, offset = 0x4, fixed_abs, tag = 'smem constant byte address 0x4 - core index']
  #allocation1 [shape = 'u32[144,128]{1,0:T(1,128)}', space=vmem, size = 0x12000, scoped, tag = 'internal scratch']
  %s0 = inlined_call_operand.vmem [shape: f32[16,32], index: 0, kind: input, shape index: {}]
  %s1 = inlined_call_operand.vmem [shape: f32[32,128], index: 1, kind: input, shape index: {}]
  %s2 = inlined_call_operand.vmem [shape: f32[1,128], index: 2, kind: input, shape index: {}]
  %s3 = inlined_call_operand.vmem [shape: f32[16,128], index: 3, kind: output, shape index: {}]
  %s4 = sld [smem:[#allocation0]]
  $region22: #{hstasnet_forward.27} parent=0
    _
  %s6 = ssub.s32 1, %s4
  %s7 = scalar_select 0, %s6, %s4
  // Predicated region
  $region2: #{hstasnet_forward.27} parent=0 // pred_check
    _
  $region3: #{hstasnet_forward.27} parent=0 // pred_check_branch
    %9 = sbr.rel (0) target = $region5
  $region4: #{hstasnet_forward.27} parent=0 // pred_region
    _
  $region5: #{hstasnet_forward.27} parent=0 // pred_fallthru
    _
  // Predicated region
  $region6: #{hstasnet_forward.27} parent=0 // pred_check
    _
  $region7: #{hstasnet_forward.27} parent=0 // pred_check_branch
    %11 = sbr.rel (0) target = $region9
  $region8: #{hstasnet_forward.27} parent=0 // pred_region
    _
  $region9: #{hstasnet_forward.27} parent=0 // pred_fallthru
    _
  // Predicated region
  $region10: #{hstasnet_forward.27} parent=0 // pred_check
    _
  $region11: #{hstasnet_forward.27} parent=0 // pred_check_branch
    %13 = sbr.rel (0) target = $region13
  $region12: #{hstasnet_forward.27} parent=0 // pred_region
    _
  $region13: #{hstasnet_forward.27} parent=0 // pred_fallthru
    _
  %v15 = vld [vmem:[%s0] sm:$0xff]
  %v16 = vld [vmem:[%s0 + $0x8] sm:$0xff]
  %v17 = vpack.c.bf16 %v16, %v15
  %v18 = vld [vmem:[%s1] sm:$0xff]
  %v19 = vld [vmem:[%s1 + $0x8] sm:$0xff]
  %v20 = vld [vmem:[%s1 + $0x10] sm:$0xff]
  %v21 = vld [vmem:[%s1 + $0x18] sm:$0xff]
  %v22 = vpack.c.bf16 %v19, %v18
  %v23 = vpack.c.bf16 %v21, %v20
  %v24 = vld [vmem:[%s2] sm:$0x1]
  %v26 = vlaneseq
  %v27 = vshrl.u32 %v26, 7
  %v28 = vsub.s32 0, %v27
  %v29 = vrot.slane %v24, %v28
  %vm31 = vcmask 261120
  %v33 = vsel %vm31, %v17, 0
  %35 = vmatprep.subr.bf16.mxu0 0
  %36 = vmatpush1.bf16.msra.mxu0 0
  %37 = vmatprep.subr.bf16.mxu0 0
  %38 = vmatpush1.bf16.msra.mxu0 0
  %39 = vmatprep.subr.bf16.mxu0 0
  %40 = vmatpush1.bf16.msra.mxu0 0
  %41 = vmatprep.subr.bf16.mxu0 0
  %42 = vmatpush1.bf16.msra.mxu0 0
  %43 = vmatprep.subr.bf16.mxu0 0
  %44 = vmatpush1.bf16.msra.mxu0 0
  %45 = vmatprep.subr.bf16.mxu0 0
  %46 = vmatpush1.bf16.msra.mxu0 0
  %47 = vmatprep.subr.bf16.mxu0 0
  %48 = vmatpush1.bf16.msra.mxu0 %v23
  %49 = vmatprep.subr.bf16.mxu0 0
  %50 = vmatpush1.bf16.msra.mxu0 %v22
  %51 = vmatprep.subr.bf16.mxu0 0
  %52 = vmatpush2.bf16.msra.mxu0 0
  %53 = vmatprep.subr.bf16.mxu0 0
  %54 = vmatpush2.bf16.msra.mxu0 0
  %55 = vmatprep.subr.bf16.mxu0 0
  %56 = vmatpush2.bf16.msra.mxu0 0
  %57 = vmatprep.subr.bf16.mxu0 0
  %58 = vmatpush2.bf16.msra.mxu0 0
  %59 = vmatprep.subr.bf16.mxu0 0
  %60 = vmatpush2.bf16.msra.mxu0 0
  %61 = vmatprep.subr.bf16.mxu0 0
  %62 = vmatpush2.bf16.msra.mxu0 0
  %63 = vmatprep.subr.bf16.mxu0 0
  %64 = vmatpush2.bf16.msra.mxu0 0
  %65 = vmatprep.subr.bf16.mxu0 0
  %66 = vmatpush2.bf16.msra.mxu0 0
  %67 = vmatprep.mubr.bf16.mxu0 0
  %68 = vmatmul.mubr.bf16.gmra.mxu0 %v33
  %v69 = vpop.f32.mrf.mxu0
  %v70 = vadd.f32 %v29, %v69
  %v71 = vpop.f32.mrf.mxu0
  %v72 = vpop.f32.mrf.mxu0
  %v73 = vadd.f32 %v29, %v72
  %v74 = vpop.f32.mrf.mxu0
  %75 = vdwg.mxu0
  %76 = vst [vmem:[%s3] sm:$0xff] %v70
  %77 = vst [vmem:[%s3 + $0x8] sm:$0xff] %v73
  // Predicated region
  $region14: #{hstasnet_forward.27} parent=0 // pred_check
    _
  $region15: #{hstasnet_forward.27} parent=0 // pred_check_branch
    %79 = sbr.rel (0) target = $region17
  $region16: #{hstasnet_forward.27} parent=0 // pred_region
    _
  $region17: #{hstasnet_forward.27} parent=0 // pred_fallthru
    _
  // Predicated region
  $region18: #{hstasnet_forward.27} parent=0 // pred_check
    _
  $region19: #{hstasnet_forward.27} parent=0 // pred_check_branch
    %81 = sbr.rel (0) target = $region21
  $region20: #{hstasnet_forward.27} parent=0 // pred_region
    _
  $region21: #{hstasnet_forward.27} parent=0 // pred_fallthru
    _

// kernel: hstasnet_forward.23
$region0: #{hstasnet_forward.23}
  #allocation0 [shape = 'u32[]', space=smem, size = 0x4, offset = 0x4, fixed_abs, tag = 'smem constant byte address 0x4 - core index']
  #allocation1 [shape = 'u32[144,128]{1,0:T(1,128)}', space=vmem, size = 0x12000, scoped, tag = 'internal scratch']
  #allocation2 [shape = 'f32[2,64]{1,0:T(2,128)}', space=vmem, size = 0x400, scoped, tag = 'scratch operand']
  #allocation3 [shape = 'f32[2,64]{1,0:T(2,128)}', space=vmem, size = 0x400, scoped, tag = 'scratch operand']
  %s0 = inlined_call_operand.vmem [shape: f32[7,2,256], index: 0, kind: input, shape index: {}]
  %s1 = inlined_call_operand.vmem [shape: f32[64,256], index: 1, kind: input, shape index: {}]
  %s2 = inlined_call_operand.vmem [shape: f32[7,2,64], index: 2, kind: output, shape index: {}]
  %s3 = sld [smem:[#allocation0]]
  $region29: #{hstasnet_forward.23} parent=0
    _
  %s5 = ssub.s32 1, %s3
  %s6 = scalar_select 0, %s5, %s3
  // Predicated region
  $region2: #{hstasnet_forward.23} parent=0 // pred_check
    _
  $region3: #{hstasnet_forward.23} parent=0 // pred_check_branch
    %8 = sbr.rel (0) target = $region5
  $region4: #{hstasnet_forward.23} parent=0 // pred_region
    _
  $region5: #{hstasnet_forward.23} parent=0 // pred_fallthru
    _
  // Predicated region
  $region6: #{hstasnet_forward.23} parent=0 // pred_check
    _
  $region7: #{hstasnet_forward.23} parent=0 // pred_check_branch
    %10 = sbr.rel (0) target = $region9
  $region8: #{hstasnet_forward.23} parent=0 // pred_region
    _
  $region9: #{hstasnet_forward.23} parent=0 // pred_fallthru
    _
  %p12 = scmp.eq.s32.totalorder 0, 0
  // Predicated region
  $region10: #{hstasnet_forward.23} parent=0 // pred_check
    %p13 = pneg %p12
  $region11: #{hstasnet_forward.23} parent=0 // pred_check_branch
    %15 = sbr.rel (%p13) target = $region13
  $region12: #{hstasnet_forward.23} parent=0 // pred_region
    %vm16 = vcmask 517120
    %17 = vst.msk [vmem:[#allocation2] sm:$0x3] %vm16, 0.0
    %18 = vst.msk [vmem:[#allocation3] sm:$0x3] %vm16, 0.0
  $region13: #{hstasnet_forward.23} parent=0 // pred_fallthru
    _
  %v19 = vld [vmem:[%s1] sm:$0xff]
  %v20 = vld [vmem:[%s1 + $0x8] sm:$0xff]
  %v21 = vld [vmem:[%s1 + $0x10] sm:$0xff]
  %v22 = vld [vmem:[%s1 + $0x18] sm:$0xff]
  %v23 = vld [vmem:[%s1 + $0x20] sm:$0xff]
  %v24 = vld [vmem:[%s1 + $0x28] sm:$0xff]
  %v25 = vld [vmem:[%s1 + $0x30] sm:$0xff]
  %v26 = vld [vmem:[%s1 + $0x38] sm:$0xff]
  %v27 = vld [vmem:[%s1 + $0x40] sm:$0xff]
  %v28 = vld [vmem:[%s1 + $0x48] sm:$0xff]
  %v29 = vld [vmem:[%s1 + $0x50] sm:$0xff]
  %v30 = vld [vmem:[%s1 + $0x58] sm:$0xff]
  %v31 = vld [vmem:[%s1 + $0x60] sm:$0xff]
  %v32 = vld [vmem:[%s1 + $0x68] sm:$0xff]
  %v33 = vld [vmem:[%s1 + $0x70] sm:$0xff]
  %v34 = vld [vmem:[%s1 + $0x78] sm:$0xff]
  %v35 = vpack.c.bf16 %v21, %v19
  %v36 = vpack.c.bf16 %v22, %v20
  %v37 = vpack.c.bf16 %v25, %v23
  %v38 = vpack.c.bf16 %v26, %v24
  %v39 = vpack.c.bf16 %v29, %v27
  %v40 = vpack.c.bf16 %v30, %v28
  %v41 = vpack.c.bf16 %v33, %v31
  %v42 = vpack.c.bf16 %v34, %v32
  %v43 = vld [vmem:[#allocation2] sm:$0x3]
  %v44 = vld [vmem:[#allocation3] sm:$0x3]
  loop: start=0, step=1, limit=7
  $region14: #{hstasnet_forward.23} parent=0 // loop_pre_header
    _
  $region15: #{hstasnet_forward.23} parent=0 // loop_header
    %s46 = sphi 0, %s50
    %p47 = scmp.ge.s32.totalorder %s46, 7
    %v51 = vphi %v43, %v158
    %v52 = vphi %v44, %v171
  $region16: #{hstasnet_forward.23} parent=0 // loop_header_branch
    %49 = sbr.rel (%p47) target = $region20
  $region17: #{hstasnet_forward.23} parent=0 // loop_body
    %s53 = smul.u32 %s46, 2
    %s54 = smul.addr %s53, 2
    %s55 = scalar_lea.vmem %s0, %s54
    %v56 = vld [vmem:[%s55] sm:$0xf]
    %v57 = vpack.c.bf16 %v51, %v51
    %vm58 = vcmask 523264
    %v60 = vsel %vm58, %v57, 0
    %62 = vmatprep.subr.bf16.mxu0 0
    %63 = vmatpush1.bf16.msra.mxu0 0
    %64 = vmatprep.subr.bf16.mxu0 0
    %65 = vmatpush1.bf16.msra.mxu0 0
    %66 = vmatprep.subr.bf16.mxu0 0
    %67 = vmatpush1.bf16.msra.mxu0 0
    %68 = vmatprep.subr.bf16.mxu0 0
    %69 = vmatpush1.bf16.msra.mxu0 0
    %70 = vmatprep.subr.bf16.mxu0 %v42
    %71 = vmatpush1.bf16.msra.mxu0 %v41
    %72 = vmatprep.subr.bf16.mxu0 %v40
    %73 = vmatpush1.bf16.msra.mxu0 %v39
    %74 = vmatprep.subr.bf16.mxu0 %v38
    %75 = vmatpush1.bf16.msra.mxu0 %v37
    %76 = vmatprep.subr.bf16.mxu0 %v36
    %77 = vmatpush1.bf16.msra.mxu0 %v35
    %78 = vmatprep.subr.bf16.mxu0 0
    %79 = vmatpush2.bf16.msra.mxu0 0
    %80 = vmatprep.subr.bf16.mxu0 0
    %81 = vmatpush2.bf16.msra.mxu0 0
    %82 = vmatprep.subr.bf16.mxu0 0
    %83 = vmatpush2.bf16.msra.mxu0 0
    %84 = vmatprep.subr.bf16.mxu0 0
    %85 = vmatpush2.bf16.msra.mxu0 0
    %86 = vmatprep.subr.bf16.mxu0 0
    %87 = vmatpush2.bf16.msra.mxu0 0
    %88 = vmatprep.subr.bf16.mxu0 0
    %89 = vmatpush2.bf16.msra.mxu0 0
    %90 = vmatprep.subr.bf16.mxu0 0
    %91 = vmatpush2.bf16.msra.mxu0 0
    %92 = vmatprep.subr.bf16.mxu0 0
    %93 = vmatpush2.bf16.msra.mxu0 0
    %94 = vmatprep.mubr.bf16.mxu0 0
    %95 = vmatmul.mubr.bf16.gmra.mxu0 %v60
    %v96 = vpop.f32.mrf.mxu0
    %v97 = vadd.f32 0.0, %v96
    %v98 = vpop.f32.mrf.mxu0
    %v99 = vadd.f32 0.0, %v98
    %v100 = vpop.f32.mrf.mxu0
    %v101 = vpop.f32.mrf.mxu0
    %102 = vdwg.mxu0
    %v105 = vcombine.low %v97, %v99
    %v107 = vunpack.c.l.s4 1983009808
    %v108 = vunpack.c.0.s8 %v107
    %v109 = vlaneseq
    %v110 = vshrl.u32 %v109, 7
    %v111 = vsub.s32 %v108, %v110
    %v112 = vrot.slane %v105, %v111
    %v114 = vadd.f32 %v56, %v112
    %v115 = vxor.u32 %v114, 2147483648
    %v116 = vmul.f32 %v115, 1.442695
    %v117 = vpow.pop %v116
    %v118 = vadd.f32 %v117, 1.0
    %v119 = vrcp.pop %v118
    %v120 = vmul.f32 1.0, %v119
    %v122 = vrot.slane %v114, 2
    %v124 = vtanh.pop %v122
    %125 = vrot.lane.b32.xlu0 %v114, 64
    %v126 = vpop.permute.xlu0 %125
    %v127 = vrot.slane %v126, 2
    %v129 = vxor.u32 %v127, 2147483648
    %v130 = vmul.f32 %v129, 1.442695
    %v131 = vpow.pop %v130
    %v132 = vadd.f32 %v131, 1.0
    %v133 = vrcp.pop %v132
    %v134 = vmul.f32 1.0, %v133
    %v137 = vunpack.c.l.s4 1983009808
    %v138 = vunpack.c.0.s8 %v137
    %v139 = vlaneseq
    %v140 = vshrl.u32 %v139, 7
    %v141 = vsub.s32 %v138, %v140
    %v142 = vrot.slane %v52, %v141
    %143 = vrot.lane.b32.xlu0 %v142, 64
    %v144 = vpop.permute.xlu0 %143
    %v146 = vmul.f32 %v120, %v144
    %v147 = vmul.f32 %v120, %v124
    %149 = vrot.lane.b32.xlu0 %v147, 64
    %v150 = vpop.permute.xlu0 %149
    %v152 = vadd.f32 %v146, %v150
    %v153 = vtanh.pop %v152
    %155 = vrot.lane.b32.xlu0 %v153, 64
    %v156 = vpop.permute.xlu0 %155
    %v158 = vmul.f32 %v134, %v156
    %s159 = scalar_lea.vmem %s2, %s53
    %vm160 = vcmask 517120
    %161 = vst.msk [vmem:[%s159] sm:$0x3] %vm160, %v158
    %v164 = vunpack.c.l.s4 1983009808
    %v165 = vunpack.c.0.s8 %v164
    %v166 = vlaneseq
    %v167 = vshrl.u32 %v166, 7
    %v168 = vsub.s32 %v165, %v167
    %v169 = vrot.slane %v152, %v168
    %170 = vrot.lane.b32.xlu0 %v169, 64
    %v171 = vpop.permute.xlu0 %170
  $region18: #{hstasnet_forward.23} parent=0 // loop_footer
    %s50 = sadd.s32 1, %s46
  $region19: #{hstasnet_forward.23} parent=0 // loop_footer_branch
    %45 = sbr.rel target = $region15
  $region20: #{hstasnet_forward.23} parent=0 // loop_exit
    _
  %vm173 = vcmask 517120
  %174 = vst.msk [vmem:[#allocation2] sm:$0x3] %vm173, %v51
  %175 = vst.msk [vmem:[#allocation3] sm:$0x3] %vm173, %v52
  // Predicated region
  $region21: #{hstasnet_forward.23} parent=0 // pred_check
    _
  $region22: #{hstasnet_forward.23} parent=0 // pred_check_branch
    %177 = sbr.rel (0) target = $region24
  $region23: #{hstasnet_forward.23} parent=0 // pred_region
    _
  $region24: #{hstasnet_forward.23} parent=0 // pred_fallthru
    _
  // Predicated region
  $region25: #{hstasnet_forward.23} parent=0 // pred_check
    _
  $region26: #{hstasnet_forward.23} parent=0 // pred_check_branch
    %179 = sbr.rel (0) target = $region28
  $region27: #{hstasnet_forward.23} parent=0 // pred_region
    _
  $region28: #{hstasnet_forward.23} parent=0 // pred_fallthru
    _

// kernel: hstasnet_forward.29
$region0: #{hstasnet_forward.29}
  #allocation0 [shape = 'u32[]', space=smem, size = 0x4, offset = 0x4, fixed_abs, tag = 'smem constant byte address 0x4 - core index']
  #allocation1 [shape = 'u32[144,128]{1,0:T(1,128)}', space=vmem, size = 0x12000, scoped, tag = 'internal scratch']
  %s0 = inlined_call_operand.vmem [shape: f32[16,18], index: 0, kind: input, shape index: {}]
  %s1 = inlined_call_operand.vmem [shape: f32[18,32], index: 1, kind: input, shape index: {}]
  %s2 = inlined_call_operand.vmem [shape: f32[1,32], index: 2, kind: input, shape index: {}]
  %s3 = inlined_call_operand.vmem [shape: f32[16,32], index: 3, kind: output, shape index: {}]
  %s4 = sld [smem:[#allocation0]]
  $region22: #{hstasnet_forward.29} parent=0
    _
  %s6 = ssub.s32 1, %s4
  %s7 = scalar_select 0, %s6, %s4
  // Predicated region
  $region2: #{hstasnet_forward.29} parent=0 // pred_check
    _
  $region3: #{hstasnet_forward.29} parent=0 // pred_check_branch
    %9 = sbr.rel (0) target = $region5
  $region4: #{hstasnet_forward.29} parent=0 // pred_region
    _
  $region5: #{hstasnet_forward.29} parent=0 // pred_fallthru
    _
  // Predicated region
  $region6: #{hstasnet_forward.29} parent=0 // pred_check
    _
  $region7: #{hstasnet_forward.29} parent=0 // pred_check_branch
    %11 = sbr.rel (0) target = $region9
  $region8: #{hstasnet_forward.29} parent=0 // pred_region
    _
  $region9: #{hstasnet_forward.29} parent=0 // pred_fallthru
    _
  // Predicated region
  $region10: #{hstasnet_forward.29} parent=0 // pred_check
    _
  $region11: #{hstasnet_forward.29} parent=0 // pred_check_branch
    %13 = sbr.rel (0) target = $region13
  $region12: #{hstasnet_forward.29} parent=0 // pred_region
    _
  $region13: #{hstasnet_forward.29} parent=0 // pred_fallthru
    _
  %v15 = vld [vmem:[%s0] sm:$0xff]
  %v16 = vld [vmem:[%s0 + $0x8] sm:$0xff]
  %v17 = vpack.c.bf16 %v16, %v15
  %v18 = vld [vmem:[%s1] sm:$0xff]
  %v19 = vld [vmem:[%s1 + $0x8] sm:$0xff]
  %v20 = vld [vmem:[%s1 + $0x10] sm:$0x3]
  %v21 = vpack.c.bf16 %v19, %v18
  %v22 = vpack.c.bf16 %v20, %v20
  %v23 = vld [vmem:[%s2] sm:$0x1]
  %v25 = vlaneseq
  %v26 = vshrl.u32 %v25, 7
  %v27 = vsub.s32 0, %v26
  %v28 = vrot.slane %v23, %v27
  %vm30 = vcmask 146432
  %v32 = vsel %vm30, %v17, 0
  %vm34 = vcmask 1040384
  %v36 = vsel %vm34, %v22, 0
  %38 = vmatprep.subr.bf16.mxu0 0
  %39 = vmatpush1.bf16.msra.mxu0 0
  %40 = vmatprep.subr.bf16.mxu0 0
  %41 = vmatpush1.bf16.msra.mxu0 0
  %42 = vmatprep.subr.bf16.mxu0 0
  %43 = vmatpush1.bf16.msra.mxu0 0
  %44 = vmatprep.subr.bf16.mxu0 0
  %45 = vmatpush1.bf16.msra.mxu0 0
  %46 = vmatprep.subr.bf16.mxu0 0
  %47 = vmatpush1.bf16.msra.mxu0 0
  %48 = vmatprep.subr.bf16.mxu0 0
  %49 = vmatpush1.bf16.msra.mxu0 0
  %50 = vmatprep.subr.bf16.mxu0 0
  %51 = vmatpush1.bf16.msra.mxu0 %v36
  %52 = vmatprep.subr.bf16.mxu0 0
  %53 = vmatpush1.bf16.msra.mxu0 %v21
  %54 = vmatprep.subr.bf16.mxu0 0
  %55 = vmatpush2.bf16.msra.mxu0 0
  %56 = vmatprep.subr.bf16.mxu0 0
  %57 = vmatpush2.bf16.msra.mxu0 0
  %58 = vmatprep.subr.bf16.mxu0 0
  %59 = vmatpush2.bf16.msra.mxu0 0
  %60 = vmatprep.subr.bf16.mxu0 0
  %61 = vmatpush2.bf16.msra.mxu0 0
  %62 = vmatprep.subr.bf16.mxu0 0
  %63 = vmatpush2.bf16.msra.mxu0 0
  %64 = vmatprep.subr.bf16.mxu0 0
  %65 = vmatpush2.bf16.msra.mxu0 0
  %66 = vmatprep.subr.bf16.mxu0 0
  %67 = vmatpush2.bf16.msra.mxu0 0
  %68 = vmatprep.subr.bf16.mxu0 0
  %69 = vmatpush2.bf16.msra.mxu0 0
  %70 = vmatprep.mubr.bf16.mxu0 0
  %71 = vmatmul.mubr.bf16.gmra.mxu0 %v32
  %v72 = vpop.f32.mrf.mxu0
  %v73 = vadd.f32 %v28, %v72
  %v74 = vpop.f32.mrf.mxu0
  %v75 = vpop.f32.mrf.mxu0
  %v76 = vadd.f32 %v28, %v75
  %v77 = vpop.f32.mrf.mxu0
  %78 = vdwg.mxu0
  %vm79 = vcmask 261120
  %80 = vst.msk [vmem:[%s3] sm:$0xff] %vm79, %v73
  %81 = vst.msk [vmem:[%s3 + $0x8] sm:$0xff] %vm79, %v76
  // Predicated region
  $region14: #{hstasnet_forward.29} parent=0 // pred_check
    _
  $region15: #{hstasnet_forward.29} parent=0 // pred_check_branch
    %83 = sbr.rel (0) target = $region17
  $region16: #{hstasnet_forward.29} parent=0 // pred_region
    _
  $region17: #{hstasnet_forward.29} parent=0 // pred_fallthru
    _
  // Predicated region
  $region18: #{hstasnet_forward.29} parent=0 // pred_check
    _
  $region19: #{hstasnet_forward.29} parent=0 // pred_check_branch
    %85 = sbr.rel (0) target = $region21
  $region20: #{hstasnet_forward.29} parent=0 // pred_region
    _
  $region21: #{hstasnet_forward.29} parent=0 // pred_fallthru
    _

// kernel: mul.0
$region0: #{mul.0}
  #allocation0 [shape = 's32[1]{0}', space=sflag, size = 0x4, scoped, tag = 'scoped memory for mul.0']
  %s0 = inlined_call_operand.vmem [shape: f32[56,32], index: 0, kind: input, shape index: {}]
  %s1 = inlined_call_operand.vmem [shape: f32[56,32], index: 1, kind: input, shape index: {}]
  %s2 = inlined_call_operand.vmem [shape: f32[56,32], index: 2, kind: output, shape index: {}]
  %v3 = vld [vmem:[%s0] sm:$0xff]
  %v4 = vld [vmem:[%s1] sm:$0xff]
  %5 = xla_tuple %v3, %v4
  %6 = xla_tuple %5
  %v7 = vmul.f32 %v3, %v4
  %8 = xla_tuple %v7
  %9 = vst [vmem:[%s2] sm:$0xff] %v7
  %s10 = scalar_lea.vmem %s0, 8
  %v11 = vld [vmem:[%s10] sm:$0xff]
  %s12 = scalar_lea.vmem %s1, 8
  %v13 = vld [vmem:[%s12] sm:$0xff]
  %14 = xla_tuple %v11, %v13
  %15 = xla_tuple %14
  %v16 = vmul.f32 %v11, %v13
  %17 = xla_tuple %v16
  %s18 = scalar_lea.vmem %s2, 8
  %19 = vst [vmem:[%s18] sm:$0xff] %v16
  %s20 = scalar_lea.vmem %s0, 16
  %v21 = vld [vmem:[%s20] sm:$0xff]
  %s22 = scalar_lea.vmem %s1, 16
  %v23 = vld [vmem:[%s22] sm:$0xff]
  %24 = xla_tuple %v21, %v23
  %25 = xla_tuple %24
  %v26 = vmul.f32 %v21, %v23
  %27 = xla_tuple %v26
  %s28 = scalar_lea.vmem %s2, 16
  %29 = vst [vmem:[%s28] sm:$0xff] %v26
  %s30 = scalar_lea.vmem %s0, 24
  %v31 = vld [vmem:[%s30] sm:$0xff]
  %s32 = scalar_lea.vmem %s1, 24
  %v33 = vld [vmem:[%s32] sm:$0xff]
  %34 = xla_tuple %v31, %v33
  %35 = xla_tuple %34
  %v36 = vmul.f32 %v31, %v33
  %37 = xla_tuple %v36
  %s38 = scalar_lea.vmem %s2, 24
  %39 = vst [vmem:[%s38] sm:$0xff] %v36
  %s40 = scalar_lea.vmem %s0, 32
  %v41 = vld [vmem:[%s40] sm:$0xff]
  %s42 = scalar_lea.vmem %s1, 32
  %v43 = vld [vmem:[%s42] sm:$0xff]
  %44 = xla_tuple %v41, %v43
  %45 = xla_tuple %44
  %v46 = vmul.f32 %v41, %v43
  %47 = xla_tuple %v46
  %s48 = scalar_lea.vmem %s2, 32
  %49 = vst [vmem:[%s48] sm:$0xff] %v46
  %s50 = scalar_lea.vmem %s0, 40
  %v51 = vld [vmem:[%s50] sm:$0xff]
  %s52 = scalar_lea.vmem %s1, 40
  %v53 = vld [vmem:[%s52] sm:$0xff]
  %54 = xla_tuple %v51, %v53
  %55 = xla_tuple %54
  %v56 = vmul.f32 %v51, %v53
  %57 = xla_tuple %v56
  %s58 = scalar_lea.vmem %s2, 40
  %59 = vst [vmem:[%s58] sm:$0xff] %v56
  %s60 = scalar_lea.vmem %s0, 48
  %v61 = vld [vmem:[%s60] sm:$0xff]
  %s62 = scalar_lea.vmem %s1, 48
  %v63 = vld [vmem:[%s62] sm:$0xff]
  %64 = xla_tuple %v61, %v63
  %65 = xla_tuple %64
  %v66 = vmul.f32 %v61, %v63
  %67 = xla_tuple %v66
  %s68 = scalar_lea.vmem %s2, 48
  %69 = vst [vmem:[%s68] sm:$0xff] %v66

// kernel: hstasnet_forward.32
$region0: #{hstasnet_forward.32}
  #allocation0 [shape = 'u32[]', space=smem, size = 0x4, offset = 0x4, fixed_abs, tag = 'smem constant byte address 0x4 - core index']
  #allocation1 [shape = 'u32[144,128]{1,0:T(1,128)}', space=vmem, size = 0x12000, scoped, tag = 'internal scratch']
  %s0 = inlined_call_operand.vmem [shape: f32[16,32], index: 0, kind: input, shape index: {}]
  %s1 = inlined_call_operand.vmem [shape: f32[32,36], index: 1, kind: input, shape index: {}]
  %s2 = inlined_call_operand.vmem [shape: f32[1,36], index: 2, kind: input, shape index: {}]
  %s3 = inlined_call_operand.vmem [shape: f32[16,36], index: 3, kind: output, shape index: {}]
  %s4 = sld [smem:[#allocation0]]
  $region22: #{hstasnet_forward.32} parent=0
    _
  %s6 = ssub.s32 1, %s4
  %s7 = scalar_select 0, %s6, %s4
  // Predicated region
  $region2: #{hstasnet_forward.32} parent=0 // pred_check
    _
  $region3: #{hstasnet_forward.32} parent=0 // pred_check_branch
    %9 = sbr.rel (0) target = $region5
  $region4: #{hstasnet_forward.32} parent=0 // pred_region
    _
  $region5: #{hstasnet_forward.32} parent=0 // pred_fallthru
    _
  // Predicated region
  $region6: #{hstasnet_forward.32} parent=0 // pred_check
    _
  $region7: #{hstasnet_forward.32} parent=0 // pred_check_branch
    %11 = sbr.rel (0) target = $region9
  $region8: #{hstasnet_forward.32} parent=0 // pred_region
    _
  $region9: #{hstasnet_forward.32} parent=0 // pred_fallthru
    _
  // Predicated region
  $region10: #{hstasnet_forward.32} parent=0 // pred_check
    _
  $region11: #{hstasnet_forward.32} parent=0 // pred_check_branch
    %13 = sbr.rel (0) target = $region13
  $region12: #{hstasnet_forward.32} parent=0 // pred_region
    _
  $region13: #{hstasnet_forward.32} parent=0 // pred_fallthru
    _
  %v15 = vld [vmem:[%s0] sm:$0xff]
  %v16 = vld [vmem:[%s0 + $0x8] sm:$0xff]
  %v17 = vpack.c.bf16 %v16, %v15
  %v18 = vld [vmem:[%s1] sm:$0xff]
  %v19 = vld [vmem:[%s1 + $0x8] sm:$0xff]
  %v20 = vld [vmem:[%s1 + $0x10] sm:$0xff]
  %v21 = vld [vmem:[%s1 + $0x18] sm:$0xff]
  %v22 = vpack.c.bf16 %v19, %v18
  %v23 = vpack.c.bf16 %v21, %v20
  %v24 = vld [vmem:[%s2] sm:$0x1]
  %v26 = vlaneseq
  %v27 = vshrl.u32 %v26, 7
  %v28 = vsub.s32 0, %v27
  %v29 = vrot.slane %v24, %v28
  %vm31 = vcmask 261120
  %v33 = vsel %vm31, %v17, 0
  %35 = vmatprep.subr.bf16.mxu0 0
  %36 = vmatpush1.bf16.msra.mxu0 0
  %37 = vmatprep.subr.bf16.mxu0 0
  %38 = vmatpush1.bf16.msra.mxu0 0
  %39 = vmatprep.subr.bf16.mxu0 0
  %40 = vmatpush1.bf16.msra.mxu0 0
  %41 = vmatprep.subr.bf16.mxu0 0
  %42 = vmatpush1.bf16.msra.mxu0 0
  %43 = vmatprep.subr.bf16.mxu0 0
  %44 = vmatpush1.bf16.msra.mxu0 0
  %45 = vmatprep.subr.bf16.mxu0 0
  %46 = vmatpush1.bf16.msra.mxu0 0
  %47 = vmatprep.subr.bf16.mxu0 0
  %48 = vmatpush1.bf16.msra.mxu0 %v23
  %49 = vmatprep.subr.bf16.mxu0 0
  %50 = vmatpush1.bf16.msra.mxu0 %v22
  %51 = vmatprep.subr.bf16.mxu0 0
  %52 = vmatpush2.bf16.msra.mxu0 0
  %53 = vmatprep.subr.bf16.mxu0 0
  %54 = vmatpush2.bf16.msra.mxu0 0
  %55 = vmatprep.subr.bf16.mxu0 0
  %56 = vmatpush2.bf16.msra.mxu0 0
  %57 = vmatprep.subr.bf16.mxu0 0
  %58 = vmatpush2.bf16.msra.mxu0 0
  %59 = vmatprep.subr.bf16.mxu0 0
  %60 = vmatpush2.bf16.msra.mxu0 0
  %61 = vmatprep.subr.bf16.mxu0 0
  %62 = vmatpush2.bf16.msra.mxu0 0
  %63 = vmatprep.subr.bf16.mxu0 0
  %64 = vmatpush2.bf16.msra.mxu0 0
  %65 = vmatprep.subr.bf16.mxu0 0
  %66 = vmatpush2.bf16.msra.mxu0 0
  %67 = vmatprep.mubr.bf16.mxu0 0
  %68 = vmatmul.mubr.bf16.gmra.mxu0 %v33
  %v69 = vpop.f32.mrf.mxu0
  %v70 = vadd.f32 %v29, %v69
  %v71 = vpop.f32.mrf.mxu0
  %v72 = vpop.f32.mrf.mxu0
  %v73 = vadd.f32 %v29, %v72
  %v74 = vpop.f32.mrf.mxu0
  %75 = vdwg.mxu0
  %vm76 = vcmask 293888
  %77 = vst.msk [vmem:[%s3] sm:$0xff] %vm76, %v70
  %78 = vst.msk [vmem:[%s3 + $0x8] sm:$0xff] %vm76, %v73
  // Predicated region
  $region14: #{hstasnet_forward.32} parent=0 // pred_check
    _
  $region15: #{hstasnet_forward.32} parent=0 // pred_check_branch
    %80 = sbr.rel (0) target = $region17
  $region16: #{hstasnet_forward.32} parent=0 // pred_region
    _
  $region17: #{hstasnet_forward.32} parent=0 // pred_fallthru
    _
  // Predicated region
  $region18: #{hstasnet_forward.32} parent=0 // pred_check
    _
  $region19: #{hstasnet_forward.32} parent=0 // pred_check_branch
    %82 = sbr.rel (0) target = $region21
  $region20: #{hstasnet_forward.32} parent=0 // pred_region
    _
  $region21: #{hstasnet_forward.32} parent=0 // pred_fallthru
    _

// kernel: hstasnet_forward.26
$region0: #{hstasnet_forward.26}
  #allocation0 [shape = 'u32[]', space=smem, size = 0x4, offset = 0x4, fixed_abs, tag = 'smem constant byte address 0x4 - core index']
  #allocation1 [shape = 'u32[144,128]{1,0:T(1,128)}', space=vmem, size = 0x12000, scoped, tag = 'internal scratch']
  %s0 = inlined_call_operand.vmem [shape: f32[16,64], index: 0, kind: input, shape index: {}]
  %s1 = inlined_call_operand.vmem [shape: f32[64,32], index: 1, kind: input, shape index: {}]
  %s2 = inlined_call_operand.vmem [shape: f32[1,32], index: 2, kind: input, shape index: {}]
  %s3 = inlined_call_operand.vmem [shape: f32[16,32], index: 3, kind: output, shape index: {}]
  %s4 = sld [smem:[#allocation0]]
  $region22: #{hstasnet_forward.26} parent=0
    _
  %s6 = ssub.s32 1, %s4
  %s7 = scalar_select 0, %s6, %s4
  // Predicated region
  $region2: #{hstasnet_forward.26} parent=0 // pred_check
    _
  $region3: #{hstasnet_forward.26} parent=0 // pred_check_branch
    %9 = sbr.rel (0) target = $region5
  $region4: #{hstasnet_forward.26} parent=0 // pred_region
    _
  $region5: #{hstasnet_forward.26} parent=0 // pred_fallthru
    _
  // Predicated region
  $region6: #{hstasnet_forward.26} parent=0 // pred_check
    _
  $region7: #{hstasnet_forward.26} parent=0 // pred_check_branch
    %11 = sbr.rel (0) target = $region9
  $region8: #{hstasnet_forward.26} parent=0 // pred_region
    _
  $region9: #{hstasnet_forward.26} parent=0 // pred_fallthru
    _
  // Predicated region
  $region10: #{hstasnet_forward.26} parent=0 // pred_check
    _
  $region11: #{hstasnet_forward.26} parent=0 // pred_check_branch
    %13 = sbr.rel (0) target = $region13
  $region12: #{hstasnet_forward.26} parent=0 // pred_region
    _
  $region13: #{hstasnet_forward.26} parent=0 // pred_fallthru
    _
  %v15 = vld [vmem:[%s0] sm:$0xff]
  %v16 = vld [vmem:[%s0 + $0x8] sm:$0xff]
  %v17 = vpack.c.bf16 %v16, %v15
  %v18 = vld [vmem:[%s1] sm:$0xff]
  %v19 = vld [vmem:[%s1 + $0x8] sm:$0xff]
  %v20 = vld [vmem:[%s1 + $0x10] sm:$0xff]
  %v21 = vld [vmem:[%s1 + $0x18] sm:$0xff]
  %v22 = vld [vmem:[%s1 + $0x20] sm:$0xff]
  %v23 = vld [vmem:[%s1 + $0x28] sm:$0xff]
  %v24 = vld [vmem:[%s1 + $0x30] sm:$0xff]
  %v25 = vld [vmem:[%s1 + $0x38] sm:$0xff]
  %v26 = vpack.c.bf16 %v19, %v18
  %v27 = vpack.c.bf16 %v21, %v20
  %v28 = vpack.c.bf16 %v23, %v22
  %v29 = vpack.c.bf16 %v25, %v24
  %v30 = vld [vmem:[%s2] sm:$0x1]
  %v32 = vlaneseq
  %v33 = vshrl.u32 %v32, 7
  %v34 = vsub.s32 0, %v33
  %v35 = vrot.slane %v30, %v34
  %vm37 = vcmask 523264
  %v39 = vsel %vm37, %v17, 0
  %41 = vmatprep.subr.bf16.mxu0 0
  %42 = vmatpush1.bf16.msra.mxu0 0
  %43 = vmatprep.subr.bf16.mxu0 0
  %44 = vmatpush1.bf16.msra.mxu0 0
  %45 = vmatprep.subr.bf16.mxu0 0
  %46 = vmatpush1.bf16.msra.mxu0 0
  %47 = vmatprep.subr.bf16.mxu0 0
  %48 = vmatpush1.bf16.msra.mxu0 0
  %49 = vmatprep.subr.bf16.mxu0 0
  %50 = vmatpush1.bf16.msra.mxu0 %v29
  %51 = vmatprep.subr.bf16.mxu0 0
  %52 = vmatpush1.bf16.msra.mxu0 %v28
  %53 = vmatprep.subr.bf16.mxu0 0
  %54 = vmatpush1.bf16.msra.mxu0 %v27
  %55 = vmatprep.subr.bf16.mxu0 0
  %56 = vmatpush1.bf16.msra.mxu0 %v26
  %57 = vmatprep.subr.bf16.mxu0 0
  %58 = vmatpush2.bf16.msra.mxu0 0
  %59 = vmatprep.subr.bf16.mxu0 0
  %60 = vmatpush2.bf16.msra.mxu0 0
  %61 = vmatprep.subr.bf16.mxu0 0
  %62 = vmatpush2.bf16.msra.mxu0 0
  %63 = vmatprep.subr.bf16.mxu0 0
  %64 = vmatpush2.bf16.msra.mxu0 0
  %65 = vmatprep.subr.bf16.mxu0 0
  %66 = vmatpush2.bf16.msra.mxu0 0
  %67 = vmatprep.subr.bf16.mxu0 0
  %68 = vmatpush2.bf16.msra.mxu0 0
  %69 = vmatprep.subr.bf16.mxu0 0
  %70 = vmatpush2.bf16.msra.mxu0 0
  %71 = vmatprep.subr.bf16.mxu0 0
  %72 = vmatpush2.bf16.msra.mxu0 0
  %73 = vmatprep.mubr.bf16.mxu0 0
  %74 = vmatmul.mubr.bf16.gmra.mxu0 %v39
  %v75 = vpop.f32.mrf.mxu0
  %v76 = vadd.f32 %v35, %v75
  %v77 = vpop.f32.mrf.mxu0
  %v78 = vpop.f32.mrf.mxu0
  %v79 = vadd.f32 %v35, %v78
  %v80 = vpop.f32.mrf.mxu0
  %81 = vdwg.mxu0
  %vm82 = vcmask 261120
  %83 = vst.msk [vmem:[%s3] sm:$0xff] %vm82, %v76
  %84 = vst.msk [vmem:[%s3 + $0x8] sm:$0xff] %vm82, %v79
  // Predicated region
  $region14: #{hstasnet_forward.26} parent=0 // pred_check
    _
  $region15: #{hstasnet_forward.26} parent=0 // pred_check_branch
    %86 = sbr.rel (0) target = $region17
  $region16: #{hstasnet_forward.26} parent=0 // pred_region
    _
  $region17: #{hstasnet_forward.26} parent=0 // pred_fallthru
    _
  // Predicated region
  $region18: #{hstasnet_forward.26} parent=0 // pred_check
    _
  $region19: #{hstasnet_forward.26} parent=0 // pred_check_branch
    %88 = sbr.rel (0) target = $region21
  $region20: #{hstasnet_forward.26} parent=0 // pred_region
    _
  $region21: #{hstasnet_forward.26} parent=0 // pred_fallthru
    _

// kernel: integer_pow.1
$region0: #{integer_pow.1}
  #allocation0 [shape = 's32[1]{0}', space=sflag, size = 0x4, scoped, tag = 'scoped memory for integer_pow.1']
  %s0 = inlined_call_operand.vmem [shape: f32[16], index: 0, kind: input, shape index: {}, may-alias: {0,1}]
  %s1 = inlined_call_operand.vmem [shape: f32[16], index: 1, kind: input, shape index: {}, may-alias: {0,1}]
  %s2 = inlined_call_operand.vmem [shape: f32[16], index: 2, kind: output, shape index: {}]
  %v3 = vld [vmem:[%s0] sm:$0x1]
  %v4 = vld [vmem:[%s1] sm:$0x1]
  %5 = xla_tuple %v3, %v4
  %6 = xla_tuple %5
  %v7 = vmul.f32 %v3, %v4
  %8 = xla_tuple %v7
  %9 = vst [vmem:[%s2] sm:$0x1] %v7

// kernel: hstasnet_forward.33
$region0: #{hstasnet_forward.33}
  #allocation0 [shape = 'u32[]', space=smem, size = 0x4, offset = 0x4, fixed_abs, tag = 'smem constant byte address 0x4 - core index']
  #allocation1 [shape = 'u32[144,128]{1,0:T(1,128)}', space=vmem, size = 0x12000, scoped, tag = 'internal scratch']
  %s0 = inlined_call_operand.vmem [shape: f32[56,18], index: 0, kind: input, shape index: {}]
  %s1 = inlined_call_operand.vmem [shape: f32[18,16], index: 1, kind: input, shape index: {}]
  %s2 = inlined_call_operand.vmem [shape: f32[1,16], index: 2, kind: input, shape index: {}]
  %s3 = inlined_call_operand.vmem [shape: f32[56,16], index: 3, kind: output, shape index: {}]
  %s4 = sld [smem:[#allocation0]]
  $region22: #{hstasnet_forward.33} parent=0
    _
  %s6 = ssub.s32 1, %s4
  %s7 = scalar_select 0, %s6, %s4
  // Predicated region
  $region2: #{hstasnet_forward.33} parent=0 // pred_check
    _
  $region3: #{hstasnet_forward.33} parent=0 // pred_check_branch
    %9 = sbr.rel (0) target = $region5
  $region4: #{hstasnet_forward.33} parent=0 // pred_region
    _
  $region5: #{hstasnet_forward.33} parent=0 // pred_fallthru
    _
  // Predicated region
  $region6: #{hstasnet_forward.33} parent=0 // pred_check
    _
  $region7: #{hstasnet_forward.33} parent=0 // pred_check_branch
    %11 = sbr.rel (0) target = $region9
  $region8: #{hstasnet_forward.33} parent=0 // pred_region
    _
  $region9: #{hstasnet_forward.33} parent=0 // pred_fallthru
    _
  // Predicated region
  $region10: #{hstasnet_forward.33} parent=0 // pred_check
    _
  $region11: #{hstasnet_forward.33} parent=0 // pred_check_branch
    %13 = sbr.rel (0) target = $region13
  $region12: #{hstasnet_forward.33} parent=0 // pred_region
    _
  $region13: #{hstasnet_forward.33} parent=0 // pred_fallthru
    _
  %v15 = vld [vmem:[%s0] sm:$0xff]
  %v16 = vld [vmem:[%s0 + $0x8] sm:$0xff]
  %v17 = vld [vmem:[%s0 + $0x10] sm:$0xff]
  %v18 = vld [vmem:[%s0 + $0x18] sm:$0xff]
  %v19 = vld [vmem:[%s0 + $0x20] sm:$0xff]
  %v20 = vld [vmem:[%s0 + $0x28] sm:$0xff]
  %v21 = vld [vmem:[%s0 + $0x30] sm:$0xff]
  %v22 = vpack.c.bf16 %v16, %v15
  %v23 = vpack.c.bf16 %v18, %v17
  %v24 = vpack.c.bf16 %v20, %v19
  %v25 = vpack.c.bf16 %v21, %v21
  %v26 = vld [vmem:[%s1] sm:$0xff]
  %v27 = vld [vmem:[%s1 + $0x8] sm:$0xff]
  %v28 = vld [vmem:[%s1 + $0x10] sm:$0x3]
  %v29 = vpack.c.bf16 %v27, %v26
  %v30 = vpack.c.bf16 %v28, %v28
  %v31 = vld [vmem:[%s2] sm:$0x1]
  %v33 = vlaneseq
  %v34 = vshrl.u32 %v33, 7
  %v35 = vsub.s32 0, %v34
  %v36 = vrot.slane %v31, %v35
  %vm38 = vcmask 146432
  %v40 = vsel %vm38, %v22, 0
  %v43 = vsel %vm38, %v23, 0
  %v46 = vsel %vm38, %v24, 0
  %v49 = vsel %vm38, %v25, 0
  %vm51 = vcmask 1040384
  %v53 = vsel %vm51, %v30, 0
  %55 = vmatprep.subr.bf16.mxu0 0
  %56 = vmatpush1.bf16.msra.mxu0 0
  %57 = vmatprep.subr.bf16.mxu0 0
  %58 = vmatpush1.bf16.msra.mxu0 0
  %59 = vmatprep.subr.bf16.mxu0 0
  %60 = vmatpush1.bf16.msra.mxu0 0
  %61 = vmatprep.subr.bf16.mxu0 0
  %62 = vmatpush1.bf16.msra.mxu0 0
  %63 = vmatprep.subr.bf16.mxu0 0
  %64 = vmatpush1.bf16.msra.mxu0 0
  %65 = vmatprep.subr.bf16.mxu0 0
  %66 = vmatpush1.bf16.msra.mxu0 0
  %67 = vmatprep.subr.bf16.mxu0 0
  %68 = vmatpush1.bf16.msra.mxu0 %v53
  %69 = vmatprep.subr.bf16.mxu0 0
  %70 = vmatpush1.bf16.msra.mxu0 %v29
  %71 = vmatprep.subr.bf16.mxu0 0
  %72 = vmatpush2.bf16.msra.mxu0 0
  %73 = vmatprep.subr.bf16.mxu0 0
  %74 = vmatpush2.bf16.msra.mxu0 0
  %75 = vmatprep.subr.bf16.mxu0 0
  %76 = vmatpush2.bf16.msra.mxu0 0
  %77 = vmatprep.subr.bf16.mxu0 0
  %78 = vmatpush2.bf16.msra.mxu0 0
  %79 = vmatprep.subr.bf16.mxu0 0
  %80 = vmatpush2.bf16.msra.mxu0 0
  %81 = vmatprep.subr.bf16.mxu0 0
  %82 = vmatpush2.bf16.msra.mxu0 0
  %83 = vmatprep.subr.bf16.mxu0 0
  %84 = vmatpush2.bf16.msra.mxu0 0
  %85 = vmatprep.subr.bf16.mxu0 0
  %86 = vmatpush2.bf16.msra.mxu0 0
  %87 = vmatprep.mubr.bf16.mxu0 0
  %88 = vmatmul.mubr.bf16.gmra.mxu0 %v40
  %v89 = vpop.f32.mrf.mxu0
  %v90 = vadd.f32 %v36, %v89
  %v91 = vpop.f32.mrf.mxu0
  %v92 = vpop.f32.mrf.mxu0
  %v93 = vadd.f32 %v36, %v92
  %v94 = vpop.f32.mrf.mxu0
  %95 = vmatprep.mubr.bf16.mxu0 0
  %96 = vmatmul.mubr.bf16.gmra.mxu0 %v43
  %v97 = vpop.f32.mrf.mxu0
  %v98 = vadd.f32 %v36, %v97
  %v99 = vpop.f32.mrf.mxu0
  %v100 = vpop.f32.mrf.mxu0
  %v101 = vadd.f32 %v36, %v100
  %v102 = vpop.f32.mrf.mxu0
  %103 = vmatprep.mubr.bf16.mxu0 0
  %104 = vmatmul.mubr.bf16.gmra.mxu0 %v46
  %v105 = vpop.f32.mrf.mxu0
  %v106 = vadd.f32 %v36, %v105
  %v107 = vpop.f32.mrf.mxu0
  %v108 = vpop.f32.mrf.mxu0
  %v109 = vadd.f32 %v36, %v108
  %v110 = vpop.f32.mrf.mxu0
  %111 = vmatprep.mubr.bf16.mxu0 0
  %112 = vmatmul.mubr.bf16.gmra.mxu0 %v49
  %v113 = vpop.f32.mrf.mxu0
  %v114 = vadd.f32 %v36, %v113
  %v115 = vpop.f32.mrf.mxu0
  %v116 = vpop.f32.mrf.mxu0
  %v117 = vpop.f32.mrf.mxu0
  %118 = vdwg.mxu0
  %vm119 = vcmask 130048
  %120 = vst.msk [vmem:[%s3] sm:$0xff] %vm119, %v90
  %121 = vst.msk [vmem:[%s3 + $0x8] sm:$0xff] %vm119, %v93
  %122 = vst.msk [vmem:[%s3 + $0x10] sm:$0xff] %vm119, %v98
  %123 = vst.msk [vmem:[%s3 + $0x18] sm:$0xff] %vm119, %v101
  %124 = vst.msk [vmem:[%s3 + $0x20] sm:$0xff] %vm119, %v106
  %125 = vst.msk [vmem:[%s3 + $0x28] sm:$0xff] %vm119, %v109
  %126 = vst.msk [vmem:[%s3 + $0x30] sm:$0xff] %vm119, %v114
  // Predicated region
  $region14: #{hstasnet_forward.33} parent=0 // pred_check
    _
  $region15: #{hstasnet_forward.33} parent=0 // pred_check_branch
    %128 = sbr.rel (0) target = $region17
  $region16: #{hstasnet_forward.33} parent=0 // pred_region
    _
  $region17: #{hstasnet_forward.33} parent=0 // pred_fallthru
    _
  // Predicated region
  $region18: #{hstasnet_forward.33} parent=0 // pred_check
    _
  $region19: #{hstasnet_forward.33} parent=0 // pred_check_branch
    %130 = sbr.rel (0) target = $region21
  $region20: #{hstasnet_forward.33} parent=0 // pred_region
    _
  $region21: #{hstasnet_forward.33} parent=0 // pred_fallthru
    _

// kernel: hstasnet_forward.31
$region0: #{hstasnet_forward.31}
  #allocation0 [shape = 'u32[]', space=smem, size = 0x4, offset = 0x4, fixed_abs, tag = 'smem constant byte address 0x4 - core index']
  #allocation1 [shape = 'u32[144,128]{1,0:T(1,128)}', space=vmem, size = 0x12000, scoped, tag = 'internal scratch']
  %s0 = inlined_call_operand.vmem [shape: f32[56,32], index: 0, kind: input, shape index: {}]
  %s1 = inlined_call_operand.vmem [shape: f32[32,16], index: 1, kind: input, shape index: {}]
  %s2 = inlined_call_operand.vmem [shape: f32[1,16], index: 2, kind: input, shape index: {}]
  %s3 = inlined_call_operand.vmem [shape: f32[56,16], index: 3, kind: output, shape index: {}]
  %s4 = sld [smem:[#allocation0]]
  $region22: #{hstasnet_forward.31} parent=0
    _
  %s6 = ssub.s32 1, %s4
  %s7 = scalar_select 0, %s6, %s4
  // Predicated region
  $region2: #{hstasnet_forward.31} parent=0 // pred_check
    _
  $region3: #{hstasnet_forward.31} parent=0 // pred_check_branch
    %9 = sbr.rel (0) target = $region5
  $region4: #{hstasnet_forward.31} parent=0 // pred_region
    _
  $region5: #{hstasnet_forward.31} parent=0 // pred_fallthru
    _
  // Predicated region
  $region6: #{hstasnet_forward.31} parent=0 // pred_check
    _
  $region7: #{hstasnet_forward.31} parent=0 // pred_check_branch
    %11 = sbr.rel (0) target = $region9
  $region8: #{hstasnet_forward.31} parent=0 // pred_region
    _
  $region9: #{hstasnet_forward.31} parent=0 // pred_fallthru
    _
  // Predicated region
  $region10: #{hstasnet_forward.31} parent=0 // pred_check
    _
  $region11: #{hstasnet_forward.31} parent=0 // pred_check_branch
    %13 = sbr.rel (0) target = $region13
  $region12: #{hstasnet_forward.31} parent=0 // pred_region
    _
  $region13: #{hstasnet_forward.31} parent=0 // pred_fallthru
    _
  %v15 = vld [vmem:[%s0] sm:$0xff]
  %v16 = vld [vmem:[%s0 + $0x8] sm:$0xff]
  %v17 = vld [vmem:[%s0 + $0x10] sm:$0xff]
  %v18 = vld [vmem:[%s0 + $0x18] sm:$0xff]
  %v19 = vld [vmem:[%s0 + $0x20] sm:$0xff]
  %v20 = vld [vmem:[%s0 + $0x28] sm:$0xff]
  %v21 = vld [vmem:[%s0 + $0x30] sm:$0xff]
  %v22 = vpack.c.bf16 %v16, %v15
  %v23 = vpack.c.bf16 %v18, %v17
  %v24 = vpack.c.bf16 %v20, %v19
  %v25 = vpack.c.bf16 %v21, %v21
  %v26 = vld [vmem:[%s1] sm:$0xff]
  %v27 = vld [vmem:[%s1 + $0x8] sm:$0xff]
  %v28 = vld [vmem:[%s1 + $0x10] sm:$0xff]
  %v29 = vld [vmem:[%s1 + $0x18] sm:$0xff]
  %v30 = vpack.c.bf16 %v27, %v26
  %v31 = vpack.c.bf16 %v29, %v28
  %v32 = vld [vmem:[%s2] sm:$0x1]
  %v34 = vlaneseq
  %v35 = vshrl.u32 %v34, 7
  %v36 = vsub.s32 0, %v35
  %v37 = vrot.slane %v32, %v36
  %vm39 = vcmask 261120
  %v41 = vsel %vm39, %v22, 0
  %v44 = vsel %vm39, %v23, 0
  %v47 = vsel %vm39, %v24, 0
  %v50 = vsel %vm39, %v25, 0
  %52 = vmatprep.subr.bf16.mxu0 0
  %53 = vmatpush1.bf16.msra.mxu0 0
  %54 = vmatprep.subr.bf16.mxu0 0
  %55 = vmatpush1.bf16.msra.mxu0 0
  %56 = vmatprep.subr.bf16.mxu0 0
  %57 = vmatpush1.bf16.msra.mxu0 0
  %58 = vmatprep.subr.bf16.mxu0 0
  %59 = vmatpush1.bf16.msra.mxu0 0
  %60 = vmatprep.subr.bf16.mxu0 0
  %61 = vmatpush1.bf16.msra.mxu0 0
  %62 = vmatprep.subr.bf16.mxu0 0
  %63 = vmatpush1.bf16.msra.mxu0 0
  %64 = vmatprep.subr.bf16.mxu0 0
  %65 = vmatpush1.bf16.msra.mxu0 %v31
  %66 = vmatprep.subr.bf16.mxu0 0
  %67 = vmatpush1.bf16.msra.mxu0 %v30
  %68 = vmatprep.subr.bf16.mxu0 0
  %69 = vmatpush2.bf16.msra.mxu0 0
  %70 = vmatprep.subr.bf16.mxu0 0
  %71 = vmatpush2.bf16.msra.mxu0 0
  %72 = vmatprep.subr.bf16.mxu0 0
  %73 = vmatpush2.bf16.msra.mxu0 0
  %74 = vmatprep.subr.bf16.mxu0 0
  %75 = vmatpush2.bf16.msra.mxu0 0
  %76 = vmatprep.subr.bf16.mxu0 0
  %77 = vmatpush2.bf16.msra.mxu0 0
  %78 = vmatprep.subr.bf16.mxu0 0
  %79 = vmatpush2.bf16.msra.mxu0 0
  %80 = vmatprep.subr.bf16.mxu0 0
  %81 = vmatpush2.bf16.msra.mxu0 0
  %82 = vmatprep.subr.bf16.mxu0 0
  %83 = vmatpush2.bf16.msra.mxu0 0
  %84 = vmatprep.mubr.bf16.mxu0 0
  %85 = vmatmul.mubr.bf16.gmra.mxu0 %v41
  %v86 = vpop.f32.mrf.mxu0
  %v87 = vadd.f32 %v37, %v86
  %v88 = vpop.f32.mrf.mxu0
  %v89 = vpop.f32.mrf.mxu0
  %v90 = vadd.f32 %v37, %v89
  %v91 = vpop.f32.mrf.mxu0
  %92 = vmatprep.mubr.bf16.mxu0 0
  %93 = vmatmul.mubr.bf16.gmra.mxu0 %v44
  %v94 = vpop.f32.mrf.mxu0
  %v95 = vadd.f32 %v37, %v94
  %v96 = vpop.f32.mrf.mxu0
  %v97 = vpop.f32.mrf.mxu0
  %v98 = vadd.f32 %v37, %v97
  %v99 = vpop.f32.mrf.mxu0
  %100 = vmatprep.mubr.bf16.mxu0 0
  %101 = vmatmul.mubr.bf16.gmra.mxu0 %v47
  %v102 = vpop.f32.mrf.mxu0
  %v103 = vadd.f32 %v37, %v102
  %v104 = vpop.f32.mrf.mxu0
  %v105 = vpop.f32.mrf.mxu0
  %v106 = vadd.f32 %v37, %v105
  %v107 = vpop.f32.mrf.mxu0
  %108 = vmatprep.mubr.bf16.mxu0 0
  %109 = vmatmul.mubr.bf16.gmra.mxu0 %v50
  %v110 = vpop.f32.mrf.mxu0
  %v111 = vadd.f32 %v37, %v110
  %v112 = vpop.f32.mrf.mxu0
  %v113 = vpop.f32.mrf.mxu0
  %v114 = vpop.f32.mrf.mxu0
  %115 = vdwg.mxu0
  %vm116 = vcmask 130048
  %117 = vst.msk [vmem:[%s3] sm:$0xff] %vm116, %v87
  %118 = vst.msk [vmem:[%s3 + $0x8] sm:$0xff] %vm116, %v90
  %119 = vst.msk [vmem:[%s3 + $0x10] sm:$0xff] %vm116, %v95
  %120 = vst.msk [vmem:[%s3 + $0x18] sm:$0xff] %vm116, %v98
  %121 = vst.msk [vmem:[%s3 + $0x20] sm:$0xff] %vm116, %v103
  %122 = vst.msk [vmem:[%s3 + $0x28] sm:$0xff] %vm116, %v106
  %123 = vst.msk [vmem:[%s3 + $0x30] sm:$0xff] %vm116, %v111
  // Predicated region
  $region14: #{hstasnet_forward.31} parent=0 // pred_check
    _
  $region15: #{hstasnet_forward.31} parent=0 // pred_check_branch
    %125 = sbr.rel (0) target = $region17
  $region16: #{hstasnet_forward.31} parent=0 // pred_region
    _
  $region17: #{hstasnet_forward.31} parent=0 // pred_fallthru
    _
  // Predicated region
  $region18: #{hstasnet_forward.31} parent=0 // pred_check
    _
  $region19: #{hstasnet_forward.31} parent=0 // pred_check_branch
    %127 = sbr.rel (0) target = $region21
  $region20: #{hstasnet_forward.31} parent=0 // pred_region
    _
  $region21: #{hstasnet_forward.31} parent=0 // pred_fallthru
    _

</llo_original>
